<compile_context>
chip_gen: v7x
topology: tpu7x:2x2x1
jax: 0.10.0
libtpu: 0.0.40
codegen_flags: <defaults>
</compile_context>

<pallas_src>
import math
import functools

import jax
import jax.numpy as jnp
from jax import lax
from jax.experimental import pallas as pl
from jax.experimental.pallas import tpu as pltpu


# --------------------------------------------------------------------------
# helpers
# --------------------------------------------------------------------------
def _round_up(n, m):
    return ((n + m - 1) // m) * m


def _layernorm_f32(x, gamma, beta, eps=1e-5):
    # PyTorch nn.LayerNorm: biased variance, eps inside the sqrt.  f32 math.
    mu = jnp.mean(x, axis=-1, keepdims=True)
    var = jnp.mean((x - mu) ** 2, axis=-1, keepdims=True)
    return (x - mu) * lax.rsqrt(var + eps) * gamma + beta


def _pick_head_block(num_heads, d_k, d_model, target=256):
    """Smallest group of heads whose combined width fills the MXU lane dim.

    target=256 matches the 256-wide MXU of v6e/v7x (a 256-wide N is simply two
    passes on v5e, so it never hurts).  The block width must be a multiple of
    128 lanes (or the full d_model) so BlockSpec tiling stays lane-aligned.
    """
    for hb in range(1, num_heads + 1):
        if num_heads % hb:
            continue
        w = hb * d_k
        if w >= min(target, d_model) and (w % 128 == 0 or w == d_model):
            return hb
    return num_heads


def _pick_f_tile(d_ff, f_tile):
    """d_ff tile for streaming the FFN weights (multiple of 128, or full F)."""
    if d_ff <= f_tile:
        return d_ff
    for tf in (f_tile, 2048, 1024, 512, 256, 128):
        if tf <= f_tile and tf % 128 == 0 and d_ff % tf == 0:
            return tf
    return d_ff


def _vmem_limit_bytes(est_bytes):
    """Scoped-VMEM budget: ~85% of physical VMEM; conservative fallback."""
    try:
        cap = pltpu.get_tpu_info().vmem_capacity_bytes
    except Exception:                       # any failure -> safe default
        cap = 64 << 20                      # v7x physical VMEM (smallest)
    budget = int(cap * 0.85)                # leave compiler scratch headroom
    return int(max(32 << 20, min(est_bytes + (16 << 20), budget)))


# --------------------------------------------------------------------------
# kernel A: multi-head self-attention (head-block accumulation) + LayerNorm1
#   grid = (batch, q-tiles, head-blocks); head axis innermost ("arbitrary")
# --------------------------------------------------------------------------
def attn_ln1_kernel(x_ref, k_ref, v_ref, wq_ref, wo_ref, g1_ref, b1_ref,
                    o_ref, acc_ref, *, scale, head_block, d_k, s_valid):
    h = pl.program_id(2)

    @pl.when(h == 0)
    def _init():
        acc_ref[...] = jnp.zeros_like(acc_ref)

    xq = x_ref[0]                       # (tq, D)        query rows (+ residual)
    k = k_ref[0]                        # (S_pad, hb*dk) pre-projected keys
    v = v_ref[0]                        # (S_pad, hb*dk) pre-projected values
    wq = wq_ref[...]                    # (D, hb*dk)     Wq columns of this block
    wo = wo_ref[...]                    # (hb*dk, D)     Wo rows of this block

    # One wide Q projection for the whole head block; fold 1/sqrt(d_k) into Q
    # (tq*hb*dk multiplies instead of tq*S on the score matrix).
    q = jnp.dot(xq, wq, preferred_element_type=jnp.float32) * scale
    q = q.astype(k.dtype)

    tq, s_pad = q.shape[0], k.shape[0]
    masked = s_valid < s_pad            # static Python bool
    if masked:
        col = lax.broadcasted_iota(jnp.int32, (tq, s_pad), 1)

    # Per-head attention: short statically-unrolled loop over the head block.
    ctx_parts = []
    for i in range(head_block):
        sl = slice(i * d_k, (i + 1) * d_k)
        # scores = q_h @ k_h^T : contract last dims, no materialized transpose.
        s = lax.dot_general(q[:, sl], k[:, sl], (((1,), (1,)), ((), ())),
                            preferred_element_type=jnp.float32)       # (tq, S)
        if masked:
            s = jnp.where(col < s_valid, s, jnp.float32(-jnp.inf))
        # f32 softmax: one exp + one EUP reciprocal (exact, not approx).
        s = s - jnp.max(s, axis=-1, keepdims=True)
        p = jnp.exp(s)
        p = p * pl.reciprocal(jnp.sum(p, axis=-1, keepdims=True), approx=False)
        ctx_parts.append(jnp.dot(p.astype(v.dtype), v[:, sl],
                                 preferred_element_type=jnp.float32))  # (tq,dk)

    ctx = ctx_parts[0] if head_block == 1 else jnp.concatenate(ctx_parts, -1)
    # Fold the whole head block into the output projection at once (K = hb*dk).
    acc_ref[...] += jnp.dot(ctx.astype(wo.dtype), wo,
                            preferred_element_type=jnp.float32)        # (tq, D)

    @pl.when(h == pl.num_programs(2) - 1)
    def _finalize():
        g1 = g1_ref[...].astype(jnp.float32)
        b1 = b1_ref[...].astype(jnp.float32)
        x1 = _layernorm_f32(xq.astype(jnp.float32) + acc_ref[...], g1, b1)
        o_ref[0] = x1.astype(o_ref.dtype)


# --------------------------------------------------------------------------
# kernel B: position-wise FFN streamed over d_ff + residual + LayerNorm2
#   grid = (batch, q-tiles, F-tiles); F axis innermost ("arbitrary")
# --------------------------------------------------------------------------
def ffn_ln2_kernel(x1_ref, w1_ref, w2_ref, g2_ref, b2_ref, o_ref, acc_ref):
    f = pl.program_id(2)

    @pl.when(f == 0)
    def _init():
        acc_ref[...] = jnp.zeros_like(acc_ref)

    x1 = x1_ref[0]                      # (tq, D)
    w1 = w1_ref[...]                    # (D, TF)  fc1 slice
    w2 = w2_ref[...]                    # (TF, D)  fc2 slice
    # ReLU is elementwise over F, so applying it per F-tile is exact.
    h1 = jnp.maximum(jnp.dot(x1, w1, preferred_element_type=jnp.float32), 0.0)
    acc_ref[...] += jnp.dot(h1.astype(w2.dtype), w2,
                            preferred_element_type=jnp.float32)

    @pl.when(f == pl.num_programs(2) - 1)
    def _finalize():
        g2 = g2_ref[...].astype(jnp.float32)
        b2 = b2_ref[...].astype(jnp.float32)
        out = _layernorm_f32(x1.astype(jnp.float32) + acc_ref[...], g2, b2)
        o_ref[0] = out.astype(o_ref.dtype)


# --------------------------------------------------------------------------
# wrapper
# --------------------------------------------------------------------------
def encoder_layer(x, params, *, num_heads, q_tile=256, head_block=None,
                  f_tile=2048):
    """Pallas TPU forward pass matching the PyTorch EncoderLayer."""
    B, S, D = x.shape
    F = params["w1"].shape[1]
    assert D % num_heads == 0
    d_k = D // num_heads

    # ---- tiling decisions ---------------------------------------------------
    # q-tile: pad S up to a multiple of tq (masked softmax) instead of letting
    # tq degenerate to the full sequence.  256 rows match the 256-wide MXU of
    # v6e/v7x; pass q_tile=128 on v5e or if VMEM-tight.
    tq = _round_up(S, 8) if S <= q_tile else q_tile
    s_pad = _round_up(S, tq)
    nq = s_pad // tq

    if head_block is None:
        head_block = _pick_head_block(num_heads, d_k, D)
    assert num_heads % head_block == 0
    hbdk = head_block * d_k
    assert hbdk % 128 == 0 or hbdk == D, "head-block width must be lane-aligned"
    n_hblk = num_heads // head_block

    tf = _pick_f_tile(F, f_tile)
    nf = F // tf

    # ---- host-side (plain XLA) prep -----------------------------------------
    x_p = jnp.pad(x, ((0, 0), (0, s_pad - S), (0, 0))) if s_pad != S else x
    # K/V are projected ONCE per (batch, head) here instead of being recomputed
    # for every q-tile inside the kernel; column/row blocks of wk/wv/wq/wo are
    # already grouped by head, so no reshape/transpose of the weights is needed.
    k_full = jnp.dot(x_p, params["wk"]).astype(x.dtype)
    v_full = jnp.dot(x_p, params["wv"]).astype(x.dtype)

    # ---- VMEM budgets (conservative, per kernel) ----------------------------
    xb, wb, f32b = x.dtype.itemsize, params["wq"].dtype.itemsize, 4
    attn_est = (2 * tq * D * xb + 2 * 2 * s_pad * hbdk * xb
                + 2 * (2 * D * hbdk + 2 * D) * wb + 2 * tq * D * xb
                + f32b * (tq * D + 2 * tq * hbdk + 3 * tq * s_pad + 3 * tq * D))
    ffn_est = (2 * tq * D * xb + 2 * (D * tf + tf * D + 2 * D) * wb
               + 2 * tq * D * xb + f32b * (4 * tq * D + tq * tf))

    # TODO(synk): single-buffer the grid-invariant inputs (fc1/fc2/LN params and
    # per-head weight slices) via pipeline_mode=pl.Buffered(1); the dead second
    # pipeline buffers matter most on v7x's 64 MiB VMEM.

    # ---- kernel A: attention + residual + LayerNorm1 ------------------------
    attn_kernel = functools.partial(
        attn_ln1_kernel, scale=1.0 / math.sqrt(d_k),
        head_block=head_block, d_k=d_k, s_valid=S)

    x1 = pl.pallas_call(
        attn_kernel,
        out_shape=jax.ShapeDtypeStruct((B, s_pad, D), x.dtype),
        grid_spec=pltpu.PrefetchScalarGridSpec(
            num_scalar_prefetch=0,
            grid=(B, nq, n_hblk),
            in_specs=[
                pl.BlockSpec((1, tq, D), lambda b, q, h: (b, q, 0)),        # x
                pl.BlockSpec((1, s_pad, hbdk), lambda b, q, h: (b, 0, h)),  # K
                pl.BlockSpec((1, s_pad, hbdk), lambda b, q, h: (b, 0, h)),  # V
                pl.BlockSpec((D, hbdk), lambda b, q, h: (0, h)),            # Wq
                pl.BlockSpec((hbdk, D), lambda b, q, h: (h, 0)),            # Wo
                pl.BlockSpec((1, D), lambda b, q, h: (0, 0)),               # g1
                pl.BlockSpec((1, D), lambda b, q, h: (0, 0)),               # b1
            ],
            out_specs=pl.BlockSpec((1, tq, D), lambda b, q, h: (b, q, 0)),
            scratch_shapes=[pltpu.VMEM((tq, D), jnp.float32)],
        ),
        compiler_params=pltpu.CompilerParams(
            dimension_semantics=("parallel", "parallel", "arbitrary"),
            vmem_limit_bytes=_vmem_limit_bytes(attn_est)),
    )(x_p, k_full, v_full, params["wq"], params["wo"],
      params["g1"], params["b1"])

    # ---- kernel B: FFN streamed over d_ff + residual + LayerNorm2 -----------
    out = pl.pallas_call(
        ffn_ln2_kernel,
        out_shape=jax.ShapeDtypeStruct((B, s_pad, D), x.dtype),
        grid_spec=pltpu.PrefetchScalarGridSpec(
            num_scalar_prefetch=0,
            grid=(B, nq, nf),
            in_specs=[
                pl.BlockSpec((1, tq, D), lambda b, q, f: (b, q, 0)),   # x1
                pl.BlockSpec((D, tf), lambda b, q, f: (0, f)),         # fc1 slice
                pl.BlockSpec((tf, D), lambda b, q, f: (f, 0)),         # fc2 slice
                pl.BlockSpec((1, D), lambda b, q, f: (0, 0)),          # g2
                pl.BlockSpec((1, D), lambda b, q, f: (0, 0)),          # b2
            ],
            out_specs=pl.BlockSpec((1, tq, D), lambda b, q, f: (b, q, 0)),
            scratch_shapes=[pltpu.VMEM((tq, D), jnp.float32)],
        ),
        compiler_params=pltpu.CompilerParams(
            dimension_semantics=("parallel", "parallel", "arbitrary"),
            vmem_limit_bytes=_vmem_limit_bytes(ffn_est)),
    )(x1, params["w1"], params["w2"], params["g2"], params["b2"])

    return out[:, :S, :] if s_pad != S else out


# --------------------------------------------------------------------------
# plain-JAX reference mirroring the PyTorch module
# --------------------------------------------------------------------------
def reference_encoder_layer(x, params, *, num_heads):
    B, S, D = x.shape
    d_k = D // num_heads
    q = x @ params["wq"]
    k = x @ params["wk"]
    v = x @ params["wv"]

    def split(t):  # (B,S,D) -> (B,H,S,dk)
        return t.reshape(B, S, num_heads, d_k).transpose(0, 2, 1, 3)

    qh, kh, vh = split(q), split(k), split(v)
    scores = jnp.einsum("bhqd,bhkd->bhqk", qh, kh) / math.sqrt(d_k)
    probs = jax.nn.softmax(scores, axis=-1)
    attn = jnp.einsum("bhqk,bhkd->bhqd", probs, vh)
    attn = attn.transpose(0, 2, 1, 3).reshape(B, S, D) @ params["wo"]

    def ln(t, g, b, eps=1e-5):
        mu = jnp.mean(t, axis=-1, keepdims=True)
        var = jnp.mean((t - mu) ** 2, axis=-1, keepdims=True)
        return (t - mu) / jnp.sqrt(var + eps) * g + b

    x1 = ln(x + attn, params["g1"][0], params["b1"][0])
    ff = jnp.maximum(x1 @ params["w1"], 0.0) @ params["w2"]
    return ln(x1 + ff, params["g2"][0], params["b2"][0])


def _make_params(key, d_model, d_ff):
    keys = jax.random.split(key, 6)
    init = lambda k, s: (0.05 * jax.random.normal(k, s)).astype(jnp.float32)
    return {
        # Linear weights stored pre-transposed as (in, out): y = x @ W.
        "wq": init(keys[0], (d_model, d_model)),
        "wk": init(keys[1], (d_model, d_model)),
        "wv": init(keys[2], (d_model, d_model)),
        "wo": init(keys[3], (d_model, d_model)),
        "w1": init(keys[4], (d_model, d_ff)),
        "w2": init(keys[5], (d_ff, d_model)),
        # PyTorch LayerNorm default init: weight = 1, bias = 0.
        "g1": jnp.ones((1, d_model), jnp.float32),
        "b1": jnp.zeros((1, d_model), jnp.float32),
        "g2": jnp.ones((1, d_model), jnp.float32),
        "b2": jnp.zeros((1, d_model), jnp.float32),
    }


if __name__ == "__main__":
    key = jax.random.PRNGKey(0)

    # Case 1: small shapes consistent with the module (B=2, S=8, D=32, H=4, F=64).
    B, S, D, H, F = 2, 8, 32, 4, 64
    k1, k2, key = jax.random.split(key, 3)
    params = _make_params(k1, D, F)
    x = (0.05 * jax.random.normal(k2, (B, S, D))).astype(jnp.float32)

    out = jax.block_until_ready(encoder_layer(x, params, num_heads=H))
    ref = reference_encoder_layer(x, params, num_heads=H)
    assert out.shape == (B, S, D)
    assert jnp.allclose(out, ref, atol=2e-4, rtol=2e-4), "case 1 mismatch"

    # Case 2: exercises q-tile padding + softmax masking, multi-head-block
    # accumulation and d_ff streaming (all accumulation/masking paths).
    B2, S2, D2, H2, F2 = 2, 12, 256, 4, 256
    k3, k4, key = jax.random.split(key, 3)
    params2 = _make_params(k3, D2, F2)
    x2 = (0.05 * jax.random.normal(k4, (B2, S2, D2))).astype(jnp.float32)

    out2 = jax.block_until_ready(
        encoder_layer(x2, params2, num_heads=H2,
                      q_tile=8, head_block=2, f_tile=128))
    ref2 = reference_encoder_layer(x2, params2, num_heads=H2)
    assert out2.shape == (B2, S2, D2)
    assert jnp.allclose(out2, ref2, atol=2e-4, rtol=2e-4), "case 2 mismatch"

    print("KERNEL_OK")
</pallas_src>

<mosaic_0001>
module attributes {stable_mosaic.version = 11 : i64} {
  func.func @attn_ln1_kernel(%arg0: i32, %arg1: i32, %arg2: i32, %arg3: memref<1x8x32xf32, #tpu.memory_space<vmem>>, %arg4: memref<1x8x32xf32, #tpu.memory_space<vmem>>, %arg5: memref<1x8x32xf32, #tpu.memory_space<vmem>>, %arg6: memref<32x32xf32, #tpu.memory_space<vmem>>, %arg7: memref<32x32xf32, #tpu.memory_space<vmem>>, %arg8: memref<1x32xf32, #tpu.memory_space<vmem>>, %arg9: memref<1x32xf32, #tpu.memory_space<vmem>>, %arg10: memref<1x8x32xf32, #tpu.memory_space<vmem>>, %arg11: memref<8x32xf32, #tpu.memory_space<vmem>>) attributes {dimension_semantics = [#tpu.dimension_semantics<parallel>, #tpu.dimension_semantics<parallel>, #tpu.dimension_semantics<arbitrary>], iteration_bounds = array<i64: 2, 1, 1>, scalar_prefetch = 0 : i64, scratch_operands = 1 : i64, tpu.core_type = #tpu.core_type<tc>, window_params = [{transform_indices = @transform_0, window_bounds = array<i64: 1, 8, 32>}, {transform_indices = @transform_1, window_bounds = array<i64: 1, 8, 32>}, {transform_indices = @transform_2, window_bounds = array<i64: 1, 8, 32>}, {transform_indices = @transform_3, window_bounds = array<i64: 32, 32>}, {transform_indices = @transform_4, window_bounds = array<i64: 32, 32>}, {pipeline_mode = #tpu.pipeline_mode<synchronous>, transform_indices = @transform_5, window_bounds = array<i64: 1, 32>}, {pipeline_mode = #tpu.pipeline_mode<synchronous>, transform_indices = @transform_6, window_bounds = array<i64: 1, 32>}, {transform_indices = @transform_7, window_bounds = array<i64: 1, 8, 32>}]} {
    %c0_i32 = arith.constant 0 : i32
    %0 = arith.cmpi eq, %arg2, %c0_i32 : i32
    %1 = arith.extui %0 : i1 to i32
    %c0_i32_0 = arith.constant 0 : i32
    %2 = arith.cmpi ne, %1, %c0_i32_0 : i32
    scf.if %2 {
      %cst_37 = arith.constant 0.000000e+00 : f32
      %82 = vector.broadcast %cst_37 : f32 to vector<8x32xf32>
      %c0_38 = arith.constant 0 : index
      %c0_39 = arith.constant 0 : index
      %83 = vector.load %arg11[%c0_38, %c0_39] : memref<8x32xf32, #tpu.memory_space<vmem>>, vector<8x32xf32>
      tpu.vector_store %arg11[%c0_38, %c0_39], %82 {strides = array<i32>} : memref<8x32xf32, #tpu.memory_space<vmem>>, vector<8x32xf32>,
    } else {
    }
    %c0 = arith.constant 0 : index
    %c0_1 = arith.constant 0 : index
    %c0_2 = arith.constant 0 : index
    %3 = vector.load %arg3[%c0, %c0_1, %c0_2] : memref<1x8x32xf32, #tpu.memory_space<vmem>>, vector<1x8x32xf32>
    %4 = vector.shape_cast %3 : vector<1x8x32xf32> to vector<8x32xf32>
    %c0_3 = arith.constant 0 : index
    %c0_4 = arith.constant 0 : index
    %c0_5 = arith.constant 0 : index
    %5 = vector.load %arg4[%c0_3, %c0_4, %c0_5] : memref<1x8x32xf32, #tpu.memory_space<vmem>>, vector<1x8x32xf32>
    %6 = vector.shape_cast %5 : vector<1x8x32xf32> to vector<8x32xf32>
    %c0_6 = arith.constant 0 : index
    %c0_7 = arith.constant 0 : index
    %c0_8 = arith.constant 0 : index
    %7 = vector.load %arg5[%c0_6, %c0_7, %c0_8] : memref<1x8x32xf32, #tpu.memory_space<vmem>>, vector<1x8x32xf32>
    %8 = vector.shape_cast %7 : vector<1x8x32xf32> to vector<8x32xf32>
    %c0_9 = arith.constant 0 : index
    %c0_10 = arith.constant 0 : index
    %9 = vector.load %arg6[%c0_9, %c0_10] : memref<32x32xf32, #tpu.memory_space<vmem>>, vector<32x32xf32>
    %c0_11 = arith.constant 0 : index
    %c0_12 = arith.constant 0 : index
    %10 = vector.load %arg7[%c0_11, %c0_12] : memref<32x32xf32, #tpu.memory_space<vmem>>, vector<32x32xf32>
    %cst = arith.constant dense<0.000000e+00> : vector<8x32xf32>
    %11 = tpu.matmul %4, %9, %cst {dimension_numbers = #tpu.dot_dimension_numbers<[1], [0], [0], [1], [0, 0, 1, 1], [], []>} : vector<8x32xf32>, vector<32x32xf32>, vector<8x32xf32> -> vector<8x32xf32>
    %cst_13 = arith.constant 0.353553385 : f32
    %12 = vector.broadcast %cst_13 : f32 to vector<8x32xf32>
    %13 = arith.mulf %11, %12 : vector<8x32xf32>
    %14 = vector.extract_strided_slice %13 {offsets = [0, 0], sizes = [8, 8], strides = [1, 1]} : vector<8x32xf32> to vector<8x8xf32>
    %15 = vector.extract_strided_slice %6 {offsets = [0, 0], sizes = [8, 8], strides = [1, 1]} : vector<8x32xf32> to vector<8x8xf32>
    %cst_14 = arith.constant dense<0.000000e+00> : vector<8x8xf32>
    %16 = tpu.matmul %14, %15, %cst_14 {dimension_numbers = #tpu.dot_dimension_numbers<[1], [1], [0], [0], [0, 0, 1, 0], [], []>} : vector<8x8xf32>, vector<8x8xf32>, vector<8x8xf32> -> vector<8x8xf32>
    %cst_15 = arith.constant dense<0xFF800000> : vector<8xf32>
    %17 = vector.multi_reduction <maximumf>, %16, %cst_15 [1] : vector<8x8xf32> to vector<8xf32>
    %18 = vector.shape_cast %17 : vector<8xf32> to vector<8x1xf32>
    %19 = vector.broadcast %18 : vector<8x1xf32> to vector<8x8xf32>
    %20 = arith.subf %16, %19 : vector<8x8xf32>
    %21 = math.exp %20 : vector<8x8xf32>
    %cst_16 = arith.constant dense<0.000000e+00> : vector<8xf32>
    %22 = vector.multi_reduction <add>, %21, %cst_16 [1] : vector<8x8xf32> to vector<8xf32>
    %23 = vector.shape_cast %22 : vector<8xf32> to vector<8x1xf32>
    %24 = tpu.reciprocal %23 : vector<8x1xf32> -> vector<8x1xf32>
    %25 = vector.broadcast %24 : vector<8x1xf32> to vector<8x8xf32>
    %26 = arith.mulf %21, %25 : vector<8x8xf32>
    %27 = vector.extract_strided_slice %8 {offsets = [0, 0], sizes = [8, 8], strides = [1, 1]} : vector<8x32xf32> to vector<8x8xf32>
    %cst_17 = arith.constant dense<0.000000e+00> : vector<8x8xf32>
    %28 = tpu.matmul %26, %27, %cst_17 {dimension_numbers = #tpu.dot_dimension_numbers<[1], [0], [0], [1], [0, 0, 1, 1], [], []>} : vector<8x8xf32>, vector<8x8xf32>, vector<8x8xf32> -> vector<8x8xf32>
    %29 = vector.extract_strided_slice %13 {offsets = [0, 8], sizes = [8, 8], strides = [1, 1]} : vector<8x32xf32> to vector<8x8xf32>
    %30 = vector.extract_strided_slice %6 {offsets = [0, 8], sizes = [8, 8], strides = [1, 1]} : vector<8x32xf32> to vector<8x8xf32>
    %cst_18 = arith.constant dense<0.000000e+00> : vector<8x8xf32>
    %31 = tpu.matmul %29, %30, %cst_18 {dimension_numbers = #tpu.dot_dimension_numbers<[1], [1], [0], [0], [0, 0, 1, 0], [], []>} : vector<8x8xf32>, vector<8x8xf32>, vector<8x8xf32> -> vector<8x8xf32>
    %cst_19 = arith.constant dense<0xFF800000> : vector<8xf32>
    %32 = vector.multi_reduction <maximumf>, %31, %cst_19 [1] : vector<8x8xf32> to vector<8xf32>
    %33 = vector.shape_cast %32 : vector<8xf32> to vector<8x1xf32>
    %34 = vector.broadcast %33 : vector<8x1xf32> to vector<8x8xf32>
    %35 = arith.subf %31, %34 : vector<8x8xf32>
    %36 = math.exp %35 : vector<8x8xf32>
    %cst_20 = arith.constant dense<0.000000e+00> : vector<8xf32>
    %37 = vector.multi_reduction <add>, %36, %cst_20 [1] : vector<8x8xf32> to vector<8xf32>
    %38 = vector.shape_cast %37 : vector<8xf32> to vector<8x1xf32>
    %39 = tpu.reciprocal %38 : vector<8x1xf32> -> vector<8x1xf32>
    %40 = vector.broadcast %39 : vector<8x1xf32> to vector<8x8xf32>
    %41 = arith.mulf %36, %40 : vector<8x8xf32>
    %42 = vector.extract_strided_slice %8 {offsets = [0, 8], sizes = [8, 8], strides = [1, 1]} : vector<8x32xf32> to vector<8x8xf32>
    %cst_21 = arith.constant dense<0.000000e+00> : vector<8x8xf32>
    %43 = tpu.matmul %41, %42, %cst_21 {dimension_numbers = #tpu.dot_dimension_numbers<[1], [0], [0], [1], [0, 0, 1, 1], [], []>} : vector<8x8xf32>, vector<8x8xf32>, vector<8x8xf32> -> vector<8x8xf32>
    %44 = vector.extract_strided_slice %13 {offsets = [0, 16], sizes = [8, 8], strides = [1, 1]} : vector<8x32xf32> to vector<8x8xf32>
    %45 = vector.extract_strided_slice %6 {offsets = [0, 16], sizes = [8, 8], strides = [1, 1]} : vector<8x32xf32> to vector<8x8xf32>
    %cst_22 = arith.constant dense<0.000000e+00> : vector<8x8xf32>
    %46 = tpu.matmul %44, %45, %cst_22 {dimension_numbers = #tpu.dot_dimension_numbers<[1], [1], [0], [0], [0, 0, 1, 0], [], []>} : vector<8x8xf32>, vector<8x8xf32>, vector<8x8xf32> -> vector<8x8xf32>
    %cst_23 = arith.constant dense<0xFF800000> : vector<8xf32>
    %47 = vector.multi_reduction <maximumf>, %46, %cst_23 [1] : vector<8x8xf32> to vector<8xf32>
    %48 = vector.shape_cast %47 : vector<8xf32> to vector<8x1xf32>
    %49 = vector.broadcast %48 : vector<8x1xf32> to vector<8x8xf32>
    %50 = arith.subf %46, %49 : vector<8x8xf32>
    %51 = math.exp %50 : vector<8x8xf32>
    %cst_24 = arith.constant dense<0.000000e+00> : vector<8xf32>
    %52 = vector.multi_reduction <add>, %51, %cst_24 [1] : vector<8x8xf32> to vector<8xf32>
    %53 = vector.shape_cast %52 : vector<8xf32> to vector<8x1xf32>
    %54 = tpu.reciprocal %53 : vector<8x1xf32> -> vector<8x1xf32>
    %55 = vector.broadcast %54 : vector<8x1xf32> to vector<8x8xf32>
    %56 = arith.mulf %51, %55 : vector<8x8xf32>
    %57 = vector.extract_strided_slice %8 {offsets = [0, 16], sizes = [8, 8], strides = [1, 1]} : vector<8x32xf32> to vector<8x8xf32>
    %cst_25 = arith.constant dense<0.000000e+00> : vector<8x8xf32>
    %58 = tpu.matmul %56, %57, %cst_25 {dimension_numbers = #tpu.dot_dimension_numbers<[1], [0], [0], [1], [0, 0, 1, 1], [], []>} : vector<8x8xf32>, vector<8x8xf32>, vector<8x8xf32> -> vector<8x8xf32>
    %59 = vector.extract_strided_slice %13 {offsets = [0, 24], sizes = [8, 8], strides = [1, 1]} : vector<8x32xf32> to vector<8x8xf32>
    %60 = vector.extract_strided_slice %6 {offsets = [0, 24], sizes = [8, 8], strides = [1, 1]} : vector<8x32xf32> to vector<8x8xf32>
    %cst_26 = arith.constant dense<0.000000e+00> : vector<8x8xf32>
    %61 = tpu.matmul %59, %60, %cst_26 {dimension_numbers = #tpu.dot_dimension_numbers<[1], [1], [0], [0], [0, 0, 1, 0], [], []>} : vector<8x8xf32>, vector<8x8xf32>, vector<8x8xf32> -> vector<8x8xf32>
    %cst_27 = arith.constant dense<0xFF800000> : vector<8xf32>
    %62 = vector.multi_reduction <maximumf>, %61, %cst_27 [1] : vector<8x8xf32> to vector<8xf32>
    %63 = vector.shape_cast %62 : vector<8xf32> to vector<8x1xf32>
    %64 = vector.broadcast %63 : vector<8x1xf32> to vector<8x8xf32>
    %65 = arith.subf %61, %64 : vector<8x8xf32>
    %66 = math.exp %65 : vector<8x8xf32>
    %cst_28 = arith.constant dense<0.000000e+00> : vector<8xf32>
    %67 = vector.multi_reduction <add>, %66, %cst_28 [1] : vector<8x8xf32> to vector<8xf32>
    %68 = vector.shape_cast %67 : vector<8xf32> to vector<8x1xf32>
    %69 = tpu.reciprocal %68 : vector<8x1xf32> -> vector<8x1xf32>
    %70 = vector.broadcast %69 : vector<8x1xf32> to vector<8x8xf32>
    %71 = arith.mulf %66, %70 : vector<8x8xf32>
    %72 = vector.extract_strided_slice %8 {offsets = [0, 24], sizes = [8, 8], strides = [1, 1]} : vector<8x32xf32> to vector<8x8xf32>
    %cst_29 = arith.constant dense<0.000000e+00> : vector<8x8xf32>
    %73 = tpu.matmul %71, %72, %cst_29 {dimension_numbers = #tpu.dot_dimension_numbers<[1], [0], [0], [1], [0, 0, 1, 1], [], []>} : vector<8x8xf32>, vector<8x8xf32>, vector<8x8xf32> -> vector<8x8xf32>
    %74 = tpu.concatenate %28, %43, %58, %73 in 1 : vector<8x8xf32>, vector<8x8xf32>, vector<8x8xf32>, vector<8x8xf32> -> vector<8x32xf32>
    %c0_30 = arith.constant 0 : index
    %c0_31 = arith.constant 0 : index
    %75 = vector.load %arg11[%c0_30, %c0_31] : memref<8x32xf32, #tpu.memory_space<vmem>>, vector<8x32xf32>
    %cst_32 = arith.constant dense<0.000000e+00> : vector<8x32xf32>
    %76 = tpu.matmul %74, %10, %cst_32 {dimension_numbers = #tpu.dot_dimension_numbers<[1], [0], [0], [1], [0, 0, 1, 1], [], []>} : vector<8x32xf32>, vector<32x32xf32>, vector<8x32xf32> -> vector<8x32xf32>
    %77 = arith.addf %75, %76 : vector<8x32xf32>
    %c0_33 = arith.constant 0 : index
    %c0_34 = arith.constant 0 : index
    %78 = vector.load %arg11[%c0_33, %c0_34] : memref<8x32xf32, #tpu.memory_space<vmem>>, vector<8x32xf32>
    tpu.vector_store %arg11[%c0_33, %c0_34], %77 {strides = array<i32>} : memref<8x32xf32, #tpu.memory_space<vmem>>, vector<8x32xf32>,
    %c0_i32_35 = arith.constant 0 : i32
    %79 = arith.cmpi eq, %arg2, %c0_i32_35 : i32
    %80 = arith.extui %79 : i1 to i32
    %c0_i32_36 = arith.constant 0 : i32
    %81 = arith.cmpi ne, %80, %c0_i32_36 : i32
    scf.if %81 {
      %c0_37 = arith.constant 0 : index
      %c0_38 = arith.constant 0 : index
      %82 = vector.load %arg8[%c0_37, %c0_38] : memref<1x32xf32, #tpu.memory_space<vmem>>, vector<1x32xf32>
      %c0_39 = arith.constant 0 : index
      %c0_40 = arith.constant 0 : index
      %83 = vector.load %arg9[%c0_39, %c0_40] : memref<1x32xf32, #tpu.memory_space<vmem>>, vector<1x32xf32>
      %c0_41 = arith.constant 0 : index
      %c0_42 = arith.constant 0 : index
      %84 = vector.load %arg11[%c0_41, %c0_42] : memref<8x32xf32, #tpu.memory_space<vmem>>, vector<8x32xf32>
      %85 = arith.addf %4, %84 : vector<8x32xf32>
      %cst_43 = arith.constant dense<0.000000e+00> : vector<8xf32>
      %86 = vector.multi_reduction <add>, %85, %cst_43 [1] : vector<8x32xf32> to vector<8xf32>
      %87 = vector.shape_cast %86 : vector<8xf32> to vector<8x1xf32>
      %cst_44 = arith.constant 3.200000e+01 : f32
      %88 = vector.broadcast %cst_44 : f32 to vector<8x1xf32>
      %89 = arith.divf %87, %88 : vector<8x1xf32>
      %90 = vector.broadcast %89 : vector<8x1xf32> to vector<8x32xf32>
      %91 = arith.subf %85, %90 : vector<8x32xf32>
      %92 = arith.mulf %91, %91 : vector<8x32xf32>
      %cst_45 = arith.constant dense<0.000000e+00> : vector<8xf32>
      %93 = vector.multi_reduction <add>, %92, %cst_45 [1] : vector<8x32xf32> to vector<8xf32>
      %94 = vector.shape_cast %93 : vector<8xf32> to vector<8x1xf32>
      %cst_46 = arith.constant 3.200000e+01 : f32
      %95 = vector.broadcast %cst_46 : f32 to vector<8x1xf32>
      %96 = arith.divf %94, %95 : vector<8x1xf32>
      %97 = vector.broadcast %89 : vector<8x1xf32> to vector<8x32xf32>
      %98 = arith.subf %85, %97 : vector<8x32xf32>
      %cst_47 = arith.constant 9.99999974E-6 : f32
      %99 = vector.broadcast %cst_47 : f32 to vector<8x1xf32>
      %100 = arith.addf %96, %99 : vector<8x1xf32>
      %101 = math.rsqrt %100 : vector<8x1xf32>
      %102 = vector.broadcast %101 : vector<8x1xf32> to vector<8x32xf32>
      %103 = arith.mulf %98, %102 : vector<8x32xf32>
      %104 = vector.broadcast %82 : vector<1x32xf32> to vector<8x32xf32>
      %105 = arith.mulf %103, %104 : vector<8x32xf32>
      %106 = vector.broadcast %83 : vector<1x32xf32> to vector<8x32xf32>
      %107 = arith.addf %105, %106 : vector<8x32xf32>
      %c0_48 = arith.constant 0 : index
      %c0_49 = arith.constant 0 : index
      %c0_50 = arith.constant 0 : index
      %108 = vector.load %arg10[%c0_48, %c0_49, %c0_50] : memref<1x8x32xf32, #tpu.memory_space<vmem>>, vector<1x8x32xf32>
      %109 = vector.shape_cast %108 : vector<1x8x32xf32> to vector<8x32xf32>
      %110 = vector.shape_cast %107 : vector<8x32xf32> to vector<1x8x32xf32>
      tpu.vector_store %arg10[%c0_48, %c0_49, %c0_50], %110 {strides = array<i32>} : memref<1x8x32xf32, #tpu.memory_space<vmem>>, vector<1x8x32xf32>,
    } else {
    }
    return
  }
  func.func @transform_0(%arg0: i32, %arg1: i32, %arg2: i32) -> (i32, i32, i32) {
    %c0_i32 = arith.constant 0 : i32
    %c0_i32_0 = arith.constant 0 : i32
    return %arg0, %arg1, %c0_i32 : i32, i32, i32
  }
  func.func @transform_1(%arg0: i32, %arg1: i32, %arg2: i32) -> (i32, i32, i32) {
    %c0_i32 = arith.constant 0 : i32
    %c0_i32_0 = arith.constant 0 : i32
    return %arg0, %c0_i32, %arg2 : i32, i32, i32
  }
  func.func @transform_2(%arg0: i32, %arg1: i32, %arg2: i32) -> (i32, i32, i32) {
    %c0_i32 = arith.constant 0 : i32
    %c0_i32_0 = arith.constant 0 : i32
    return %arg0, %c0_i32, %arg2 : i32, i32, i32
  }
  func.func @transform_3(%arg0: i32, %arg1: i32, %arg2: i32) -> (i32, i32) {
    %c0_i32 = arith.constant 0 : i32
    %c0_i32_0 = arith.constant 0 : i32
    return %c0_i32, %arg2 : i32, i32
  }
  func.func @transform_4(%arg0: i32, %arg1: i32, %arg2: i32) -> (i32, i32) {
    %c0_i32 = arith.constant 0 : i32
    %c0_i32_0 = arith.constant 0 : i32
    return %arg2, %c0_i32 : i32, i32
  }
  func.func @transform_5(%arg0: i32, %arg1: i32, %arg2: i32) -> (i32, i32) {
    %c0_i32 = arith.constant 0 : i32
    %c0_i32_0 = arith.constant 0 : i32
    %c0_i32_1 = arith.constant 0 : i32
    return %c0_i32, %c0_i32_0 : i32, i32
  }
  func.func @transform_6(%arg0: i32, %arg1: i32, %arg2: i32) -> (i32, i32) {
    %c0_i32 = arith.constant 0 : i32
    %c0_i32_0 = arith.constant 0 : i32
    %c0_i32_1 = arith.constant 0 : i32
    return %c0_i32, %c0_i32_0 : i32, i32
  }
  func.func @transform_7(%arg0: i32, %arg1: i32, %arg2: i32) -> (i32, i32, i32) {
    %c0_i32 = arith.constant 0 : i32
    %c0_i32_0 = arith.constant 0 : i32
    return %arg0, %arg1, %c0_i32 : i32, i32, i32
  }
}

</mosaic_0001>

<llo_original>
// kernel: tpu_custom_call.1
$region0: #{tpu_custom_call.1}
  #allocation0 [shape = 'u32[]', space=smem, size = 0x4, offset = 0x4, fixed_abs, tag = 'smem constant byte address 0x4 - core index']
  #allocation1 [shape = 'u32[144,128]{1,0:T(1,128)}', space=vmem, size = 0x12000, scoped, tag = 'internal scratch']
  #allocation2 [shape = 'f32[8,32]{1,0:T(8,128)}', space=vmem, size = 0x1000, scoped, tag = 'scratch operand']
  %s0 = inlined_call_operand.hbm [shape: f32[2,8,32], index: 0, kind: input, shape index: {}]
  %s1 = inlined_call_operand.hbm [shape: f32[2,8,32], index: 1, kind: input, shape index: {}]
  %s2 = inlined_call_operand.hbm [shape: f32[2,8,32], index: 2, kind: input, shape index: {}]
  %s3 = inlined_call_operand.hbm [shape: f32[32,32], index: 3, kind: input, shape index: {}]
  %s4 = inlined_call_operand.hbm [shape: f32[32,32], index: 4, kind: input, shape index: {}]
  %s5 = inlined_call_operand.vmem [shape: f32[1,32], index: 5, kind: input, shape index: {}]
  %s6 = inlined_call_operand.vmem [shape: f32[1,32], index: 6, kind: input, shape index: {}]
  %s7 = inlined_call_operand.hbm [shape: f32[2,8,32], index: 7, kind: output, shape index: {}]
  %s8 = sld [smem:[#allocation0]]
  $region89: #{tpu_custom_call.1} parent=0
    _
  %s10 = ssub.s32 1, %s8
  %s11 = scalar_select 0, %s10, %s8
  $region1: #{tpu_custom_call.1} parent=0
    #allocation3 [shape = 'u8[8192]{0}', space=vmem, size = 0x2000, scoped, tag = 'input window, operand 0']
    #allocation4 [shape = 's32[2]{0}', space=sflag, size = 0x8, scoped, tag = 'scoped memory for tpu_custom_call.1']
    #allocation5 [shape = 's32[2]{0}', space=sflag, size = 0x8, scoped, tag = 'scoped memory for tpu_custom_call.1']
    #allocation6 [shape = 'u8[8192]{0}', space=vmem, size = 0x2000, scoped, tag = 'input window, operand 1']
    #allocation7 [shape = 's32[2]{0}', space=sflag, size = 0x8, scoped, tag = 'scoped memory for tpu_custom_call.1']
    #allocation8 [shape = 'u8[8192]{0}', space=vmem, size = 0x2000, scoped, tag = 'input window, operand 2']
    #allocation9 [shape = 'u8[16384]{0}', space=vmem, size = 0x4000, scoped, tag = 'input window, operand 3, single buffered']
    #allocation10 [shape = 's32[1]{0}', space=sflag, size = 0x4, scoped, tag = 'scoped memory for tpu_custom_call.1']
    #allocation11 [shape = 'u8[16384]{0}', space=vmem, size = 0x4000, scoped, tag = 'input window, operand 4, single buffered']
    #allocation12 [shape = 'u8[8192]{0}', space=vmem, size = 0x2000, scoped, tag = 'output window, operand 0']
    %12 = vsyncpa [#allocation4], 0
    %s13 = scalar_lea.sflag [#allocation4], 1
    %14 = vsyncpa %s13, 0
    %15 = vsyncpa [#allocation7], 0
    %s16 = scalar_lea.sflag [#allocation7], 1
    %17 = vsyncpa %s16, 0
    %18 = vsyncpa [#allocation10], 0
    %19 = vsyncpa [#allocation5], 0
    %s20 = scalar_lea.sflag [#allocation5], 1
    %21 = vsyncpa %s20, 0
    loop: start=0, step=1, limit=4
    $region2: #{tpu_custom_call.1} parent=1 // loop_pre_header
      _
    $region3: #{tpu_custom_call.1} parent=1 // loop_header
      %s23 = sphi 0, %s27
      %p24 = scmp.ge.s32.totalorder %s23, 4
      %s30 = sphi 0, %s49
      %s31 = sphi 0, %s45
      %s32 = sphi 0, %s41
      %s33 = sphi 0, %s30
      %s34 = sphi 0, %s31
      %s35 = sphi 0, %s32
      %s36 = sphi 0, %s33
      %s37 = sphi 0, %s34
      %s38 = sphi 0, %s35
      %s54 = sphi 0, %s56
      %s57 = sphi 0, %s54
      %s58 = sphi 0, %s57
      %s74 = sphi 0, %s58
      %s82 = sphi 0, %s84
      %s85 = sphi 0, %s82
      %s86 = sphi 0, %s85
      %s102 = sphi 0, %s86
      %s110 = sphi 0, %s112
      %s113 = sphi 0, %s110
      %s114 = sphi 0, %s113
      %s130 = sphi 0, %s114
      %s136 = sphi 0, %s138
      %s139 = sphi 0, %s136
      %s140 = sphi 0, %s139
      %s156 = sphi 0, %s140
      %s162 = sphi 0, %s164
      %s165 = sphi 0, %s162
      %s166 = sphi 0, %s165
      %s182 = sphi 0, %s166
      %s186 = sphi 0, %s186
      %s188 = sphi 0, %s186
      %s189 = sphi 0, %s188
      %s203 = sphi 0, %s189
      %s207 = sphi 0, %s207
      %s209 = sphi 0, %s207
      %s210 = sphi 0, %s209
      %s224 = sphi 0, %s210
      %s232 = sphi 0, %s234
      %s235 = sphi 0, %s232
      %s236 = sphi 0, %s235
      %s252 = sphi 0, %s236
    $region4: #{tpu_custom_call.1} parent=1 // loop_header_branch
      %26 = sbr.rel (%p24) target = $region8
    $region5: #{tpu_custom_call.1} parent=1 // loop_body
      %s28 = ssub.s32 %s23, 1
      %s29 = ssub.s32 %s23, 2
      %s39 = sadd.s32 1, %s32
      %p40 = scmp.ge.s32.totalorder %s39, 1
      %s41 = scalar_select %p40, 0, %s39
      %s42 = sadd.s32 1, %s31
      %s43 = scalar_select %p40, %s42, %s31
      %p44 = scmp.ge.s32.totalorder %s43, 1
      %s45 = scalar_select %p44, 0, %s43
      %s46 = sadd.s32 1, %s30
      %s47 = scalar_select %p44, %s46, %s30
      %p48 = scmp.ge.s32.totalorder %s47, 2
      %s49 = scalar_select %p48, 0, %s47
      %s50 = ssub.s32 %s30, %s49
      %s51 = ssub.s32 %s31, %s45
      %s52 = sor.u32 %s50, %s51
      %p53 = scmp.eq.s32.totalorder %s52, 0
      %s55 = sadd.s32 %s54, 1
      %s56 = scalar_select %p53, %s54, %s55
      %p59 = pneg %p53
      %p60 = scmp.eq.s32.totalorder %s23, 1
      %p61 = por %p59, %p60
      %p62 = scmp.ne.s32.totalorder %s54, %s57
      %p63 = scmp.eq.s32.totalorder %s23, 0
      %p64 = por %p62, %p63
      %p65 = scmp.ne.s32.totalorder %s54, %s57
      %p66 = scmp.eq.s32.totalorder %s28, 1
      %p67 = por %p65, %p66
      %p68 = scmp.ne.s32.totalorder %s57, %s58
      %p69 = scmp.eq.s32.totalorder %s28, 0
      %p70 = por %p68, %p69
      %p71 = scmp.ne.s32.totalorder %s57, %s58
      %p72 = scmp.eq.s32.totalorder %s29, 1
      %p73 = por %p71, %p72
      %p75 = scmp.ne.s32.totalorder %s58, %s74
      %p76 = scmp.eq.s32.totalorder %s29, 0
      %p77 = por %p75, %p76
      %s78 = ssub.s32 %s30, %s49
      %s79 = ssub.s32 %s32, %s41
      %s80 = sor.u32 %s78, %s79
      %p81 = scmp.eq.s32.totalorder %s80, 0
      %s83 = sadd.s32 %s82, 1
      %s84 = scalar_select %p81, %s82, %s83
      %p87 = pneg %p81
      %p88 = scmp.eq.s32.totalorder %s23, 1
      %p89 = por %p87, %p88
      %p90 = scmp.ne.s32.totalorder %s82, %s85
      %p91 = scmp.eq.s32.totalorder %s23, 0
      %p92 = por %p90, %p91
      %p93 = scmp.ne.s32.totalorder %s82, %s85
      %p94 = scmp.eq.s32.totalorder %s28, 1
      %p95 = por %p93, %p94
      %p96 = scmp.ne.s32.totalorder %s85, %s86
      %p97 = scmp.eq.s32.totalorder %s28, 0
      %p98 = por %p96, %p97
      %p99 = scmp.ne.s32.totalorder %s85, %s86
      %p100 = scmp.eq.s32.totalorder %s29, 1
      %p101 = por %p99, %p100
      %p103 = scmp.ne.s32.totalorder %s86, %s102
      %p104 = scmp.eq.s32.totalorder %s29, 0
      %p105 = por %p103, %p104
      %s106 = ssub.s32 %s30, %s49
      %s107 = ssub.s32 %s32, %s41
      %s108 = sor.u32 %s106, %s107
      %p109 = scmp.eq.s32.totalorder %s108, 0
      %s111 = sadd.s32 %s110, 1
      %s112 = scalar_select %p109, %s110, %s111
      %p115 = pneg %p109
      %p116 = scmp.eq.s32.totalorder %s23, 1
      %p117 = por %p115, %p116
      %p118 = scmp.ne.s32.totalorder %s110, %s113
      %p119 = scmp.eq.s32.totalorder %s23, 0
      %p120 = por %p118, %p119
      %p121 = scmp.ne.s32.totalorder %s110, %s113
      %p122 = scmp.eq.s32.totalorder %s28, 1
      %p123 = por %p121, %p122
      %p124 = scmp.ne.s32.totalorder %s113, %s114
      %p125 = scmp.eq.s32.totalorder %s28, 0
      %p126 = por %p124, %p125
      %p127 = scmp.ne.s32.totalorder %s113, %s114
      %p128 = scmp.eq.s32.totalorder %s29, 1
      %p129 = por %p127, %p128
      %p131 = scmp.ne.s32.totalorder %s114, %s130
      %p132 = scmp.eq.s32.totalorder %s29, 0
      %p133 = por %p131, %p132
      %s134 = ssub.s32 %s32, %s41
      %p135 = scmp.eq.s32.totalorder %s134, 0
      %s137 = sadd.s32 %s136, 1
      %s138 = scalar_select %p135, %s136, %s137
      %p141 = pneg %p135
      %p142 = scmp.eq.s32.totalorder %s23, 1
      %p143 = por %p141, %p142
      %p144 = scmp.ne.s32.totalorder %s136, %s139
      %p145 = scmp.eq.s32.totalorder %s23, 0
      %p146 = por %p144, %p145
      %p147 = scmp.ne.s32.totalorder %s136, %s139
      %p148 = scmp.eq.s32.totalorder %s28, 1
      %p149 = por %p147, %p148
      %p150 = scmp.ne.s32.totalorder %s139, %s140
      %p151 = scmp.eq.s32.totalorder %s28, 0
      %p152 = por %p150, %p151
      %p153 = scmp.ne.s32.totalorder %s139, %s140
      %p154 = scmp.eq.s32.totalorder %s29, 1
      %p155 = por %p153, %p154
      %p157 = scmp.ne.s32.totalorder %s140, %s156
      %p158 = scmp.eq.s32.totalorder %s29, 0
      %p159 = por %p157, %p158
      %s160 = ssub.s32 %s32, %s41
      %p161 = scmp.eq.s32.totalorder %s160, 0
      %s163 = sadd.s32 %s162, 1
      %s164 = scalar_select %p161, %s162, %s163
      %p167 = pneg %p161
      %p168 = scmp.eq.s32.totalorder %s23, 1
      %p169 = por %p167, %p168
      %p170 = scmp.ne.s32.totalorder %s162, %s165
      %p171 = scmp.eq.s32.totalorder %s23, 0
      %p172 = por %p170, %p171
      %p173 = scmp.ne.s32.totalorder %s162, %s165
      %p174 = scmp.eq.s32.totalorder %s28, 1
      %p175 = por %p173, %p174
      %p176 = scmp.ne.s32.totalorder %s165, %s166
      %p177 = scmp.eq.s32.totalorder %s28, 0
      %p178 = por %p176, %p177
      %p179 = scmp.ne.s32.totalorder %s165, %s166
      %p180 = scmp.eq.s32.totalorder %s29, 1
      %p181 = por %p179, %p180
      %p183 = scmp.ne.s32.totalorder %s166, %s182
      %p184 = scmp.eq.s32.totalorder %s29, 0
      %p185 = por %p183, %p184
      %s187 = sadd.s32 %s186, 1
      %p190 = scmp.eq.s32.totalorder %s23, 1
      %p191 = scmp.ne.s32.totalorder %s186, %s188
      %p192 = scmp.eq.s32.totalorder %s23, 0
      %p193 = por %p191, %p192
      %p194 = scmp.ne.s32.totalorder %s186, %s188
      %p195 = scmp.eq.s32.totalorder %s28, 1
      %p196 = por %p194, %p195
      %p197 = scmp.ne.s32.totalorder %s188, %s189
      %p198 = scmp.eq.s32.totalorder %s28, 0
      %p199 = por %p197, %p198
      %p200 = scmp.ne.s32.totalorder %s188, %s189
      %p201 = scmp.eq.s32.totalorder %s29, 1
      %p202 = por %p200, %p201
      %p204 = scmp.ne.s32.totalorder %s189, %s203
      %p205 = scmp.eq.s32.totalorder %s29, 0
      %p206 = por %p204, %p205
      %s208 = sadd.s32 %s207, 1
      %p211 = scmp.eq.s32.totalorder %s23, 1
      %p212 = scmp.ne.s32.totalorder %s207, %s209
      %p213 = scmp.eq.s32.totalorder %s23, 0
      %p214 = por %p212, %p213
      %p215 = scmp.ne.s32.totalorder %s207, %s209
      %p216 = scmp.eq.s32.totalorder %s28, 1
      %p217 = por %p215, %p216
      %p218 = scmp.ne.s32.totalorder %s209, %s210
      %p219 = scmp.eq.s32.totalorder %s28, 0
      %p220 = por %p218, %p219
      %p221 = scmp.ne.s32.totalorder %s209, %s210
      %p222 = scmp.eq.s32.totalorder %s29, 1
      %p223 = por %p221, %p222
      %p225 = scmp.ne.s32.totalorder %s210, %s224
      %p226 = scmp.eq.s32.totalorder %s29, 0
      %p227 = por %p225, %p226
      %s228 = ssub.s32 %s30, %s49
      %s229 = ssub.s32 %s31, %s45
      %s230 = sor.u32 %s228, %s229
      %p231 = scmp.eq.s32.totalorder %s230, 0
      %s233 = sadd.s32 %s232, 1
      %s234 = scalar_select %p231, %s232, %s233
      %p237 = pneg %p231
      %p238 = scmp.eq.s32.totalorder %s23, 1
      %p239 = por %p237, %p238
      %p240 = scmp.ne.s32.totalorder %s232, %s235
      %p241 = scmp.eq.s32.totalorder %s23, 0
      %p242 = por %p240, %p241
      %p243 = scmp.ne.s32.totalorder %s232, %s235
      %p244 = scmp.eq.s32.totalorder %s28, 1
      %p245 = por %p243, %p244
      %p246 = scmp.ne.s32.totalorder %s235, %s236
      %p247 = scmp.eq.s32.totalorder %s28, 0
      %p248 = por %p246, %p247
      %p249 = scmp.ne.s32.totalorder %s235, %s236
      %p250 = scmp.eq.s32.totalorder %s29, 1
      %p251 = por %p249, %p250
      %p253 = scmp.ne.s32.totalorder %s236, %s252
      %p254 = scmp.eq.s32.totalorder %s29, 0
      %p255 = por %p253, %p254
      %p256 = scmp.le.s32.totalorder 1, %s23
      %p257 = scmp.lt.s32.totalorder %s23, 3
      %p258 = pnand %p256, %p257
      %p259 = pneg %p258
      // Predicated region
      $region9: #{tpu_custom_call.1} parent=5 // pred_check
        _
      $region10: #{tpu_custom_call.1} parent=5 // pred_check_branch
        %261 = sbr.rel (%p258) target = $region12
      $region11: #{tpu_custom_call.1} parent=5 // pred_region
        %s262 = ssub.s32 %s23, 1
        // Predicated region
        $region13: #{tpu_custom_call.1} parent=11 // pred_check
          %p263 = pneg %p152
        $region14: #{tpu_custom_call.1} parent=11 // pred_check_branch
          %265 = sbr.rel (%p263) target = $region16
        $region15: #{tpu_custom_call.1} parent=11 // pred_region
          %s267 = ssub.s32 512, 512
          %268 = vsyncadd [#allocation10], %s267
          %s269 = smul.addr %s35, 128
          %s270 = scalar_lea.hbm %s3, %s269
          %s271 = sshll.u32 [#allocation9], 4
          %s272 = int_to_ptr.vmem [resolvable:$true] %s271
          %277 = dma.hbm_to_vmem [thread:$0]  %s270, 512, %s272, [#allocation10], 128, 128, 8
        $region16: #{tpu_custom_call.1} parent=11 // pred_fallthru
          _
        // Predicated region
        $region17: #{tpu_custom_call.1} parent=11 // pred_check
          %p278 = pneg %p178
        $region18: #{tpu_custom_call.1} parent=11 // pred_check_branch
          %280 = sbr.rel (%p278) target = $region20
        $region19: #{tpu_custom_call.1} parent=11 // pred_region
          %s281 = smul.u32 4, %s35
          %s283 = ssub.s32 512, 512
          %284 = vsyncadd [#allocation10], %s283
          %s285 = smul.addr %s281, 128
          %s286 = scalar_lea.hbm %s4, %s285
          %s287 = sshll.u32 [#allocation11], 4
          %s288 = int_to_ptr.vmem [resolvable:$true] %s287
          %293 = dma.hbm_to_vmem [thread:$0]  %s286, 512, %s288, [#allocation10], 128, 128, 8
        $region20: #{tpu_custom_call.1} parent=11 // pred_fallthru
          _
        // Predicated region
        $region21: #{tpu_custom_call.1} parent=11 // pred_check
          %p294 = pneg %p199
        $region22: #{tpu_custom_call.1} parent=11 // pred_check_branch
          %296 = sbr.rel (%p294) target = $region24
        $region23: #{tpu_custom_call.1} parent=11 // pred_region
          _
        $region24: #{tpu_custom_call.1} parent=11 // pred_fallthru
          _
        // Predicated region
        $region25: #{tpu_custom_call.1} parent=11 // pred_check
          %p297 = pneg %p220
        $region26: #{tpu_custom_call.1} parent=11 // pred_check_branch
          %299 = sbr.rel (%p297) target = $region28
        $region27: #{tpu_custom_call.1} parent=11 // pred_region
          _
        $region28: #{tpu_custom_call.1} parent=11 // pred_fallthru
          _
      $region12: #{tpu_custom_call.1} parent=5 // pred_fallthru
        _
      %p300 = scmp.lt.s32.totalorder %s23, 2
      // Predicated region
      $region29: #{tpu_custom_call.1} parent=5 // pred_check
        %p301 = pneg %p300
      $region30: #{tpu_custom_call.1} parent=5 // pred_check_branch
        %303 = sbr.rel (%p301) target = $region32
      $region31: #{tpu_custom_call.1} parent=5 // pred_region
        // Predicated region
        $region33: #{tpu_custom_call.1} parent=31 // pred_check
          %p304 = pneg %p64
        $region34: #{tpu_custom_call.1} parent=31 // pred_check_branch
          %306 = sbr.rel (%p304) target = $region36
        $region35: #{tpu_custom_call.1} parent=31 // pred_region
          %s307 = sand.u32 %s54, 1
          %s308 = scalar_lea.sflag [#allocation4], %s307
          %s309 = sand.u32 %s54, 1
          %s310 = smul.addr %s309, 8
          %s311 = scalar_lea.vmem [#allocation3], %s310
          %s313 = ssub.s32 128, 128
          %314 = vsyncadd %s308, %s313
          %s315 = sadd.s32 %s31, %s30
          %s316 = smul.addr %s315, 128
          %s317 = scalar_lea.hbm %s0, %s316
          %s319 = sshll.u32 %s311, 4
          %s320 = int_to_ptr.vmem [resolvable:$true] %s319
          %322 = dma.hbm_to_vmem [thread:$0]  %s317, 128, %s320, %s308
        $region36: #{tpu_custom_call.1} parent=31 // pred_fallthru
          _
        // Predicated region
        $region37: #{tpu_custom_call.1} parent=31 // pred_check
          %p323 = pneg %p92
        $region38: #{tpu_custom_call.1} parent=31 // pred_check_branch
          %325 = sbr.rel (%p323) target = $region40
        $region39: #{tpu_custom_call.1} parent=31 // pred_region
          %s326 = sand.u32 %s23, 1
          %s327 = scalar_lea.sflag [#allocation7], %s326
          %s328 = sand.u32 %s82, 1
          %s329 = smul.addr %s328, 8
          %s330 = scalar_lea.vmem [#allocation6], %s329
          %s332 = ssub.s32 128, 128
          %333 = vsyncadd %s327, %s332
          %s334 = sadd.s32 %s32, %s30
          %s335 = smul.addr %s334, 128
          %s336 = scalar_lea.hbm %s1, %s335
          %s338 = sshll.u32 %s330, 4
          %s339 = int_to_ptr.vmem [resolvable:$true] %s338
          %341 = dma.hbm_to_vmem [thread:$0]  %s336, 128, %s339, %s327
        $region40: #{tpu_custom_call.1} parent=31 // pred_fallthru
          _
        // Predicated region
        $region41: #{tpu_custom_call.1} parent=31 // pred_check
          %p342 = pneg %p120
        $region42: #{tpu_custom_call.1} parent=31 // pred_check_branch
          %344 = sbr.rel (%p342) target = $region44
        $region43: #{tpu_custom_call.1} parent=31 // pred_region
          %s345 = sand.u32 %s23, 1
          %s346 = scalar_lea.sflag [#allocation7], %s345
          %s347 = sand.u32 %s110, 1
          %s348 = smul.addr %s347, 8
          %s349 = scalar_lea.vmem [#allocation8], %s348
          %s351 = ssub.s32 128, 128
          %352 = vsyncadd %s346, %s351
          %s353 = sadd.s32 %s32, %s30
          %s354 = smul.addr %s353, 128
          %s355 = scalar_lea.hbm %s2, %s354
          %s357 = sshll.u32 %s349, 4
          %s358 = int_to_ptr.vmem [resolvable:$true] %s357
          %360 = dma.hbm_to_vmem [thread:$0]  %s355, 128, %s358, %s346
        $region44: #{tpu_custom_call.1} parent=31 // pred_fallthru
          _
      $region32: #{tpu_custom_call.1} parent=5 // pred_fallthru
        _
      %p361 = scmp.le.s32.totalorder 1, %s23
      %p362 = scmp.lt.s32.totalorder %s23, 3
      %p363 = pnand %p361, %p362
      %p364 = pneg %p363
      // Predicated region
      $region45: #{tpu_custom_call.1} parent=5 // pred_check
        _
      $region46: #{tpu_custom_call.1} parent=5 // pred_check_branch
        %366 = sbr.rel (%p363) target = $region48
      $region47: #{tpu_custom_call.1} parent=5 // pred_region
        %s367 = ssub.s32 %s23, 1
        %s368 = sand.u32 %s57, 1
        %s369 = scalar_lea.sflag [#allocation4], %s368
        %s370 = sand.u32 %s57, 1
        %s371 = smul.addr %s370, 8
        %s372 = scalar_lea.vmem [#allocation3], %s371
        // Predicated region
        $region49: #{tpu_custom_call.1} parent=47 // pred_check
          %p373 = pneg %p70
        $region50: #{tpu_custom_call.1} parent=47 // pred_check_branch
          %375 = sbr.rel (%p373) target = $region52
        $region51: #{tpu_custom_call.1} parent=47 // pred_region
          %376 = dma.done %s369, 128
        $region52: #{tpu_custom_call.1} parent=47 // pred_fallthru
          _
        %s377 = sand.u32 %s28, 1
        %s378 = scalar_lea.sflag [#allocation7], %s377
        %s379 = sand.u32 %s85, 1
        %s380 = smul.addr %s379, 8
        %s381 = scalar_lea.vmem [#allocation6], %s380
        // Predicated region
        $region53: #{tpu_custom_call.1} parent=47 // pred_check
          %p382 = pneg %p98
        $region54: #{tpu_custom_call.1} parent=47 // pred_check_branch
          %384 = sbr.rel (%p382) target = $region56
        $region55: #{tpu_custom_call.1} parent=47 // pred_region
          %385 = dma.done %s378, 128
        $region56: #{tpu_custom_call.1} parent=47 // pred_fallthru
          _
        %s386 = sand.u32 %s28, 1
        %s387 = scalar_lea.sflag [#allocation7], %s386
        %s388 = sand.u32 %s113, 1
        %s389 = smul.addr %s388, 8
        %s390 = scalar_lea.vmem [#allocation8], %s389
        // Predicated region
        $region57: #{tpu_custom_call.1} parent=47 // pred_check
          %p391 = pneg %p126
        $region58: #{tpu_custom_call.1} parent=47 // pred_check_branch
          %393 = sbr.rel (%p391) target = $region60
        $region59: #{tpu_custom_call.1} parent=47 // pred_region
          %394 = dma.done %s387, 128
        $region60: #{tpu_custom_call.1} parent=47 // pred_fallthru
          _
        // Predicated region
        $region61: #{tpu_custom_call.1} parent=47 // pred_check
          %p395 = pneg %p152
        $region62: #{tpu_custom_call.1} parent=47 // pred_check_branch
          %397 = sbr.rel (%p395) target = $region64
        $region63: #{tpu_custom_call.1} parent=47 // pred_region
          %398 = dma.done [#allocation10], 512
        $region64: #{tpu_custom_call.1} parent=47 // pred_fallthru
          _
        // Predicated region
        $region65: #{tpu_custom_call.1} parent=47 // pred_check
          %p399 = pneg %p178
        $region66: #{tpu_custom_call.1} parent=47 // pred_check_branch
          %401 = sbr.rel (%p399) target = $region68
        $region67: #{tpu_custom_call.1} parent=47 // pred_region
          %402 = dma.done [#allocation10], 512
        $region68: #{tpu_custom_call.1} parent=47 // pred_fallthru
          _
        %s403 = sand.u32 %s57, 1
        %s404 = scalar_lea.sflag [#allocation4], %s403
        %s405 = sand.u32 %s57, 1
        %s406 = smul.addr %s405, 8
        %s407 = scalar_lea.vmem [#allocation3], %s406
        %p408 = pneg %p70
        %p409 = pneg %p67
        %s410 = sand.u32 %s28, 1
        %s411 = scalar_lea.sflag [#allocation7], %s410
        %s412 = sand.u32 %s85, 1
        %s413 = smul.addr %s412, 8
        %s414 = scalar_lea.vmem [#allocation6], %s413
        %p415 = pneg %p98
        %p416 = pneg %p95
        %s417 = sand.u32 %s28, 1
        %s418 = scalar_lea.sflag [#allocation7], %s417
        %s419 = sand.u32 %s113, 1
        %s420 = smul.addr %s419, 8
        %s421 = scalar_lea.vmem [#allocation8], %s420
        %p422 = pneg %p126
        %p423 = pneg %p123
        %p424 = pneg %p152
        %p425 = pneg %p149
        %p426 = pneg %p178
        %p427 = pneg %p175
        %p428 = pneg %p199
        %p429 = pneg %p196
        %p430 = pneg %p220
        %p431 = pneg %p217
        %p432 = pneg %p248
        %p433 = pneg %p245
        %s434 = sand.u32 %s235, 1
        %s435 = scalar_lea.sflag [#allocation5], %s434
        %s436 = sand.u32 %s235, 1
        %s437 = smul.addr %s436, 8
        %s438 = scalar_lea.vmem [#allocation12], %s437
        %s439 = smul.u32 4, %s35
        %p440 = scmp.eq.s32.totalorder %s35, 0
        // Predicated region
        $region69: #{tpu_custom_call.1} parent=47 // pred_check
          %p441 = pneg %p440
        $region70: #{tpu_custom_call.1} parent=47 // pred_check_branch
          %443 = sbr.rel (%p441) target = $region72
        $region71: #{tpu_custom_call.1} parent=47 // pred_region
          %vm444 = vcmask 261120
          %445 = vst.msk [vmem:[#allocation2] sm:$0xff] %vm444, 0.0
        $region72: #{tpu_custom_call.1} parent=47 // pred_fallthru
          _
        %v446 = vld [vmem:[%s372] sm:$0xff]
        %v447 = vld [vmem:[%s381] sm:$0xff]
        %v448 = vld [vmem:[%s390] sm:$0xff]
        %v449 = vld [vmem:[#allocation9] sm:$0xff]
        %v450 = vld [vmem:[#allocation9 + $0x8] sm:$0xff]
        %v451 = vld [vmem:[#allocation9 + $0x10] sm:$0xff]
        %v452 = vld [vmem:[#allocation9 + $0x18] sm:$0xff]
        %v453 = vld [vmem:[#allocation11] sm:$0xff]
        %v454 = vld [vmem:[#allocation11 + $0x8] sm:$0xff]
        %v455 = vld [vmem:[#allocation11 + $0x10] sm:$0xff]
        %v456 = vld [vmem:[#allocation11 + $0x18] sm:$0xff]
        %vm457 = vcmask 261120
        %v459 = vsel %vm457, %v446, 0
        %461 = vmatprep.subr.mxu0 0.0
        %462 = vmatpush1.msra.mxu0 %v449
        %463 = vmatprep.subr.mxu0 0.0
        %464 = vmatpush1.msra.mxu0 %v450
        %465 = vmatprep.subr.mxu0 0.0
        %466 = vmatpush1.msra.mxu0 %v451
        %467 = vmatprep.subr.mxu0 0.0
        %468 = vmatpush1.msra.mxu0 %v452
        %469 = vmatprep.subr.mxu0 0.0
        %470 = vmatpush1.msra.mxu0 0.0
        %471 = vmatprep.subr.mxu0 0.0
        %472 = vmatpush1.msra.mxu0 0.0
        %473 = vmatprep.subr.mxu0 0.0
        %474 = vmatpush1.msra.mxu0 0.0
        %475 = vmatprep.subr.mxu0 0.0
        %476 = vmatpush1.msra.mxu0 0.0
        %477 = vmatprep.subr.mxu0 0.0
        %478 = vmatpush1.msra.mxu0 0.0
        %479 = vmatprep.subr.mxu0 0.0
        %480 = vmatpush1.msra.mxu0 0.0
        %481 = vmatprep.subr.mxu0 0.0
        %482 = vmatpush1.msra.mxu0 0.0
        %483 = vmatprep.subr.mxu0 0.0
        %484 = vmatpush1.msra.mxu0 0.0
        %485 = vmatprep.subr.mxu0 0.0
        %486 = vmatpush1.msra.mxu0 0.0
        %487 = vmatprep.subr.mxu0 0.0
        %488 = vmatpush1.msra.mxu0 0.0
        %489 = vmatprep.subr.mxu0 0.0
        %490 = vmatpush1.msra.mxu0 0.0
        %491 = vmatprep.subr.mxu0 0.0
        %492 = vmatpush1.msra.mxu0 0.0
        %493 = vmatprep.subr.mxu0 0.0
        %494 = vmatpush1.msra.mxu0 0.0
        %495 = vmatprep.subr.mxu0 0.0
        %496 = vmatpush1.msra.mxu0 0.0
        %497 = vmatprep.subr.mxu0 0.0
        %498 = vmatpush1.msra.mxu0 0.0
        %499 = vmatprep.subr.mxu0 0.0
        %500 = vmatpush1.msra.mxu0 0.0
        %501 = vmatprep.subr.mxu0 0.0
        %502 = vmatpush1.msra.mxu0 0.0
        %503 = vmatprep.subr.mxu0 0.0
        %504 = vmatpush1.msra.mxu0 0.0
        %505 = vmatprep.subr.mxu0 0.0
        %506 = vmatpush1.msra.mxu0 0.0
        %507 = vmatprep.subr.mxu0 0.0
        %508 = vmatpush1.msra.mxu0 0.0
        %509 = vmatprep.subr.mxu0 0.0
        %510 = vmatpush1.msra.mxu0 0.0
        %511 = vmatprep.subr.mxu0 0.0
        %512 = vmatpush1.msra.mxu0 0.0
        %513 = vmatprep.subr.mxu0 0.0
        %514 = vmatpush1.msra.mxu0 0.0
        %515 = vmatprep.subr.mxu0 0.0
        %516 = vmatpush1.msra.mxu0 0.0
        %517 = vmatprep.subr.mxu0 0.0
        %518 = vmatpush1.msra.mxu0 0.0
        %519 = vmatprep.subr.mxu0 0.0
        %520 = vmatpush1.msra.mxu0 0.0
        %521 = vmatprep.subr.mxu0 0.0
        %522 = vmatpush1.msra.mxu0 0.0
        %523 = vmatprep.subr.mxu0 0.0
        %524 = vmatpush1.msra.mxu0 0.0
        %525 = vmatprep.mubr.f32.mxu0 0.0
        %526 = vmatmul.mubr.f32.gmra.mrb[0].mxu0 %v459
        %v527 = vpop.f32.mrb[0].mxu0
        %v528 = vadd.f32 0.0, %v527
        %v529 = vpop.f32.mrb[0].mxu0
        %530 = vdwg.mxu0
        %v531 = vmul.f32 %v528, 0.35355338
        %vm532 = vcmask 64512
        %v534 = vsel %vm532, %v531, 0
        %v537 = vsel %vm532, %v447, 0
        %539 = vmatprep.subr.mxu0 0.0
        %540 = vmatpush1.xpose.msra.mxu0 %v537
        %541 = vmatprep.subr.mxu0 0.0
        %542 = vmatpush1.xpose.msra.mxu0 0.0
        %543 = vmatprep.subr.mxu0 0.0
        %544 = vmatpush1.xpose.msra.mxu0 0.0
        %545 = vmatprep.subr.mxu0 0.0
        %546 = vmatpush1.xpose.msra.mxu0 0.0
        %547 = vmatprep.subr.mxu0 0.0
        %548 = vmatpush1.xpose.msra.mxu0 0.0
        %549 = vmatprep.subr.mxu0 0.0
        %550 = vmatpush1.xpose.msra.mxu0 0.0
        %551 = vmatprep.subr.mxu0 0.0
        %552 = vmatpush1.xpose.msra.mxu0 0.0
        %553 = vmatprep.subr.mxu0 0.0
        %554 = vmatpush1.xpose.msra.mxu0 0.0
        %555 = vmatprep.subr.mxu0 0.0
        %556 = vmatpush1.xpose.msra.mxu0 0.0
        %557 = vmatprep.subr.mxu0 0.0
        %558 = vmatpush1.xpose.msra.mxu0 0.0
        %559 = vmatprep.subr.mxu0 0.0
        %560 = vmatpush1.xpose.msra.mxu0 0.0
        %561 = vmatprep.subr.mxu0 0.0
        %562 = vmatpush1.xpose.msra.mxu0 0.0
        %563 = vmatprep.subr.mxu0 0.0
        %564 = vmatpush1.xpose.msra.mxu0 0.0
        %565 = vmatprep.subr.mxu0 0.0
        %566 = vmatpush1.xpose.msra.mxu0 0.0
        %567 = vmatprep.subr.mxu0 0.0
        %568 = vmatpush1.xpose.msra.mxu0 0.0
        %569 = vmatprep.subr.mxu0 0.0
        %570 = vmatpush1.xpose.msra.mxu0 0.0
        %571 = vmatprep.subr.mxu0 0.0
        %572 = vmatpush1.xpose.msra.mxu0 0.0
        %573 = vmatprep.subr.mxu0 0.0
        %574 = vmatpush1.xpose.msra.mxu0 0.0
        %575 = vmatprep.subr.mxu0 0.0
        %576 = vmatpush1.xpose.msra.mxu0 0.0
        %577 = vmatprep.subr.mxu0 0.0
        %578 = vmatpush1.xpose.msra.mxu0 0.0
        %579 = vmatprep.subr.mxu0 0.0
        %580 = vmatpush1.xpose.msra.mxu0 0.0
        %581 = vmatprep.subr.mxu0 0.0
        %582 = vmatpush1.xpose.msra.mxu0 0.0
        %583 = vmatprep.subr.mxu0 0.0
        %584 = vmatpush1.xpose.msra.mxu0 0.0
        %585 = vmatprep.subr.mxu0 0.0
        %586 = vmatpush1.xpose.msra.mxu0 0.0
        %587 = vmatprep.subr.mxu0 0.0
        %588 = vmatpush1.xpose.msra.mxu0 0.0
        %589 = vmatprep.subr.mxu0 0.0
        %590 = vmatpush1.xpose.msra.mxu0 0.0
        %591 = vmatprep.subr.mxu0 0.0
        %592 = vmatpush1.xpose.msra.mxu0 0.0
        %593 = vmatprep.subr.mxu0 0.0
        %594 = vmatpush1.xpose.msra.mxu0 0.0
        %595 = vmatprep.subr.mxu0 0.0
        %596 = vmatpush1.xpose.msra.mxu0 0.0
        %597 = vmatprep.subr.mxu0 0.0
        %598 = vmatpush1.xpose.msra.mxu0 0.0
        %599 = vmatprep.subr.mxu0 0.0
        %600 = vmatpush1.xpose.msra.mxu0 0.0
        %601 = vmatprep.subr.mxu0 0.0
        %602 = vmatpush1.xpose.msra.mxu0 0.0
        %603 = vmatprep.mubr.f32.mxu0 0.0
        %604 = vmatmul.mubr.f32.gmra.mrb[0].mxu0 %v534
        %v605 = vpop.f32.mrb[0].mxu0
        %v606 = vadd.f32 0.0, %v605
        %v607 = vpop.f32.mrb[0].mxu0
        %608 = vdwg.mxu0
        %v609 = vsel %vm532, %v606, -inf
        %610 = vmax.xlane.f32.xlu0 %v609
        %v611 = vpop.xlane.xlu0 %610
        %v612 = vsub.f32 %v606, %v611
        %v613 = vmul.f32 %v612, 1.442695
        %v614 = vpow.pop %v613
        %v615 = vsel %vm532, %v614, 0.0
        %616 = vadd.xlane.f32.xlu0 %v615
        %v617 = vpop.xlane.xlu0 %616
        %v618 = vrcp.pop %v617
        %v619 = vmul.f32 %v614, %v618
        %v621 = vsel %vm532, %v619, 0
        %623 = vmatprep.subr.mxu0 0.0
        %624 = vmatpush1.msra.mxu0 %v448
        %625 = vmatprep.subr.mxu0 0.0
        %626 = vmatpush1.msra.mxu0 0.0
        %627 = vmatprep.subr.mxu0 0.0
        %628 = vmatpush1.msra.mxu0 0.0
        %629 = vmatprep.subr.mxu0 0.0
        %630 = vmatpush1.msra.mxu0 0.0
        %631 = vmatprep.subr.mxu0 0.0
        %632 = vmatpush1.msra.mxu0 0.0
        %633 = vmatprep.subr.mxu0 0.0
        %634 = vmatpush1.msra.mxu0 0.0
        %635 = vmatprep.subr.mxu0 0.0
        %636 = vmatpush1.msra.mxu0 0.0
        %637 = vmatprep.subr.mxu0 0.0
        %638 = vmatpush1.msra.mxu0 0.0
        %639 = vmatprep.subr.mxu0 0.0
        %640 = vmatpush1.msra.mxu0 0.0
        %641 = vmatprep.subr.mxu0 0.0
        %642 = vmatpush1.msra.mxu0 0.0
        %643 = vmatprep.subr.mxu0 0.0
        %644 = vmatpush1.msra.mxu0 0.0
        %645 = vmatprep.subr.mxu0 0.0
        %646 = vmatpush1.msra.mxu0 0.0
        %647 = vmatprep.subr.mxu0 0.0
        %648 = vmatpush1.msra.mxu0 0.0
        %649 = vmatprep.subr.mxu0 0.0
        %650 = vmatpush1.msra.mxu0 0.0
        %651 = vmatprep.subr.mxu0 0.0
        %652 = vmatpush1.msra.mxu0 0.0
        %653 = vmatprep.subr.mxu0 0.0
        %654 = vmatpush1.msra.mxu0 0.0
        %655 = vmatprep.subr.mxu0 0.0
        %656 = vmatpush1.msra.mxu0 0.0
        %657 = vmatprep.subr.mxu0 0.0
        %658 = vmatpush1.msra.mxu0 0.0
        %659 = vmatprep.subr.mxu0 0.0
        %660 = vmatpush1.msra.mxu0 0.0
        %661 = vmatprep.subr.mxu0 0.0
        %662 = vmatpush1.msra.mxu0 0.0
        %663 = vmatprep.subr.mxu0 0.0
        %664 = vmatpush1.msra.mxu0 0.0
        %665 = vmatprep.subr.mxu0 0.0
        %666 = vmatpush1.msra.mxu0 0.0
        %667 = vmatprep.subr.mxu0 0.0
        %668 = vmatpush1.msra.mxu0 0.0
        %669 = vmatprep.subr.mxu0 0.0
        %670 = vmatpush1.msra.mxu0 0.0
        %671 = vmatprep.subr.mxu0 0.0
        %672 = vmatpush1.msra.mxu0 0.0
        %673 = vmatprep.subr.mxu0 0.0
        %674 = vmatpush1.msra.mxu0 0.0
        %675 = vmatprep.subr.mxu0 0.0
        %676 = vmatpush1.msra.mxu0 0.0
        %677 = vmatprep.subr.mxu0 0.0
        %678 = vmatpush1.msra.mxu0 0.0
        %679 = vmatprep.subr.mxu0 0.0
        %680 = vmatpush1.msra.mxu0 0.0
        %681 = vmatprep.subr.mxu0 0.0
        %682 = vmatpush1.msra.mxu0 0.0
        %683 = vmatprep.subr.mxu0 0.0
        %684 = vmatpush1.msra.mxu0 0.0
        %685 = vmatprep.subr.mxu0 0.0
        %686 = vmatpush1.msra.mxu0 0.0
        %687 = vmatprep.mubr.f32.mxu0 0.0
        %688 = vmatmul.mubr.f32.gmra.mrb[0].mxu0 %v621
        %v689 = vpop.f32.mrb[0].mxu0
        %v690 = vadd.f32 0.0, %v689
        %v691 = vpop.f32.mrb[0].mxu0
        %692 = vdwg.mxu0
        %693 = vrot.lane.b32.xlu0 %v531, 120
        %v694 = vpop.permute.xlu0 %693
        %695 = vrot.lane.b32.xlu0 %v447, 120
        %v696 = vpop.permute.xlu0 %695
        %v697 = vsel %vm532, %v694, 0
        %v699 = vsel %vm532, %v696, 0
        %701 = vmatprep.subr.mxu0 0.0
        %702 = vmatpush1.xpose.msra.mxu0 %v699
        %703 = vmatprep.subr.mxu0 0.0
        %704 = vmatpush1.xpose.msra.mxu0 0.0
        %705 = vmatprep.subr.mxu0 0.0
        %706 = vmatpush1.xpose.msra.mxu0 0.0
        %707 = vmatprep.subr.mxu0 0.0
        %708 = vmatpush1.xpose.msra.mxu0 0.0
        %709 = vmatprep.subr.mxu0 0.0
        %710 = vmatpush1.xpose.msra.mxu0 0.0
        %711 = vmatprep.subr.mxu0 0.0
        %712 = vmatpush1.xpose.msra.mxu0 0.0
        %713 = vmatprep.subr.mxu0 0.0
        %714 = vmatpush1.xpose.msra.mxu0 0.0
        %715 = vmatprep.subr.mxu0 0.0
        %716 = vmatpush1.xpose.msra.mxu0 0.0
        %717 = vmatprep.subr.mxu0 0.0
        %718 = vmatpush1.xpose.msra.mxu0 0.0
        %719 = vmatprep.subr.mxu0 0.0
        %720 = vmatpush1.xpose.msra.mxu0 0.0
        %721 = vmatprep.subr.mxu0 0.0
        %722 = vmatpush1.xpose.msra.mxu0 0.0
        %723 = vmatprep.subr.mxu0 0.0
        %724 = vmatpush1.xpose.msra.mxu0 0.0
        %725 = vmatprep.subr.mxu0 0.0
        %726 = vmatpush1.xpose.msra.mxu0 0.0
        %727 = vmatprep.subr.mxu0 0.0
        %728 = vmatpush1.xpose.msra.mxu0 0.0
        %729 = vmatprep.subr.mxu0 0.0
        %730 = vmatpush1.xpose.msra.mxu0 0.0
        %731 = vmatprep.subr.mxu0 0.0
        %732 = vmatpush1.xpose.msra.mxu0 0.0
        %733 = vmatprep.subr.mxu0 0.0
        %734 = vmatpush1.xpose.msra.mxu0 0.0
        %735 = vmatprep.subr.mxu0 0.0
        %736 = vmatpush1.xpose.msra.mxu0 0.0
        %737 = vmatprep.subr.mxu0 0.0
        %738 = vmatpush1.xpose.msra.mxu0 0.0
        %739 = vmatprep.subr.mxu0 0.0
        %740 = vmatpush1.xpose.msra.mxu0 0.0
        %741 = vmatprep.subr.mxu0 0.0
        %742 = vmatpush1.xpose.msra.mxu0 0.0
        %743 = vmatprep.subr.mxu0 0.0
        %744 = vmatpush1.xpose.msra.mxu0 0.0
        %745 = vmatprep.subr.mxu0 0.0
        %746 = vmatpush1.xpose.msra.mxu0 0.0
        %747 = vmatprep.subr.mxu0 0.0
        %748 = vmatpush1.xpose.msra.mxu0 0.0
        %749 = vmatprep.subr.mxu0 0.0
        %750 = vmatpush1.xpose.msra.mxu0 0.0
        %751 = vmatprep.subr.mxu0 0.0
        %752 = vmatpush1.xpose.msra.mxu0 0.0
        %753 = vmatprep.subr.mxu0 0.0
        %754 = vmatpush1.xpose.msra.mxu0 0.0
        %755 = vmatprep.subr.mxu0 0.0
        %756 = vmatpush1.xpose.msra.mxu0 0.0
        %757 = vmatprep.subr.mxu0 0.0
        %758 = vmatpush1.xpose.msra.mxu0 0.0
        %759 = vmatprep.subr.mxu0 0.0
        %760 = vmatpush1.xpose.msra.mxu0 0.0
        %761 = vmatprep.subr.mxu0 0.0
        %762 = vmatpush1.xpose.msra.mxu0 0.0
        %763 = vmatprep.subr.mxu0 0.0
        %764 = vmatpush1.xpose.msra.mxu0 0.0
        %765 = vmatprep.mubr.f32.mxu0 0.0
        %766 = vmatmul.mubr.f32.gmra.mrb[0].mxu0 %v697
        %v767 = vpop.f32.mrb[0].mxu0
        %v768 = vadd.f32 0.0, %v767
        %v769 = vpop.f32.mrb[0].mxu0
        %770 = vdwg.mxu0
        %v771 = vsel %vm532, %v768, -inf
        %772 = vmax.xlane.f32.xlu0 %v771
        %v773 = vpop.xlane.xlu0 %772
        %v774 = vsub.f32 %v768, %v773
        %v775 = vmul.f32 %v774, 1.442695
        %v776 = vpow.pop %v775
        %v777 = vsel %vm532, %v776, 0.0
        %778 = vadd.xlane.f32.xlu0 %v777
        %v779 = vpop.xlane.xlu0 %778
        %v780 = vrcp.pop %v779
        %v781 = vmul.f32 %v776, %v780
        %783 = vrot.lane.b32.xlu0 %v448, 120
        %v784 = vpop.permute.xlu0 %783
        %v787 = vsel %vm532, %v781, 0
        %789 = vmatprep.subr.mxu0 0.0
        %790 = vmatpush1.msra.mxu0 %v784
        %791 = vmatprep.subr.mxu0 0.0
        %792 = vmatpush1.msra.mxu0 0.0
        %793 = vmatprep.subr.mxu0 0.0
        %794 = vmatpush1.msra.mxu0 0.0
        %795 = vmatprep.subr.mxu0 0.0
        %796 = vmatpush1.msra.mxu0 0.0
        %797 = vmatprep.subr.mxu0 0.0
        %798 = vmatpush1.msra.mxu0 0.0
        %799 = vmatprep.subr.mxu0 0.0
        %800 = vmatpush1.msra.mxu0 0.0
        %801 = vmatprep.subr.mxu0 0.0
        %802 = vmatpush1.msra.mxu0 0.0
        %803 = vmatprep.subr.mxu0 0.0
        %804 = vmatpush1.msra.mxu0 0.0
        %805 = vmatprep.subr.mxu0 0.0
        %806 = vmatpush1.msra.mxu0 0.0
        %807 = vmatprep.subr.mxu0 0.0
        %808 = vmatpush1.msra.mxu0 0.0
        %809 = vmatprep.subr.mxu0 0.0
        %810 = vmatpush1.msra.mxu0 0.0
        %811 = vmatprep.subr.mxu0 0.0
        %812 = vmatpush1.msra.mxu0 0.0
        %813 = vmatprep.subr.mxu0 0.0
        %814 = vmatpush1.msra.mxu0 0.0
        %815 = vmatprep.subr.mxu0 0.0
        %816 = vmatpush1.msra.mxu0 0.0
        %817 = vmatprep.subr.mxu0 0.0
        %818 = vmatpush1.msra.mxu0 0.0
        %819 = vmatprep.subr.mxu0 0.0
        %820 = vmatpush1.msra.mxu0 0.0
        %821 = vmatprep.subr.mxu0 0.0
        %822 = vmatpush1.msra.mxu0 0.0
        %823 = vmatprep.subr.mxu0 0.0
        %824 = vmatpush1.msra.mxu0 0.0
        %825 = vmatprep.subr.mxu0 0.0
        %826 = vmatpush1.msra.mxu0 0.0
        %827 = vmatprep.subr.mxu0 0.0
        %828 = vmatpush1.msra.mxu0 0.0
        %829 = vmatprep.subr.mxu0 0.0
        %830 = vmatpush1.msra.mxu0 0.0
        %831 = vmatprep.subr.mxu0 0.0
        %832 = vmatpush1.msra.mxu0 0.0
        %833 = vmatprep.subr.mxu0 0.0
        %834 = vmatpush1.msra.mxu0 0.0
        %835 = vmatprep.subr.mxu0 0.0
        %836 = vmatpush1.msra.mxu0 0.0
        %837 = vmatprep.subr.mxu0 0.0
        %838 = vmatpush1.msra.mxu0 0.0
        %839 = vmatprep.subr.mxu0 0.0
        %840 = vmatpush1.msra.mxu0 0.0
        %841 = vmatprep.subr.mxu0 0.0
        %842 = vmatpush1.msra.mxu0 0.0
        %843 = vmatprep.subr.mxu0 0.0
        %844 = vmatpush1.msra.mxu0 0.0
        %845 = vmatprep.subr.mxu0 0.0
        %846 = vmatpush1.msra.mxu0 0.0
        %847 = vmatprep.subr.mxu0 0.0
        %848 = vmatpush1.msra.mxu0 0.0
        %849 = vmatprep.subr.mxu0 0.0
        %850 = vmatpush1.msra.mxu0 0.0
        %851 = vmatprep.subr.mxu0 0.0
        %852 = vmatpush1.msra.mxu0 0.0
        %853 = vmatprep.mubr.f32.mxu0 0.0
        %854 = vmatmul.mubr.f32.gmra.mrb[0].mxu0 %v787
        %v855 = vpop.f32.mrb[0].mxu0
        %v856 = vadd.f32 0.0, %v855
        %v857 = vpop.f32.mrb[0].mxu0
        %858 = vdwg.mxu0
        %859 = vrot.lane.b32.xlu0 %v531, 112
        %v860 = vpop.permute.xlu0 %859
        %861 = vrot.lane.b32.xlu0 %v447, 112
        %v862 = vpop.permute.xlu0 %861
        %v863 = vsel %vm532, %v860, 0
        %v865 = vsel %vm532, %v862, 0
        %867 = vmatprep.subr.mxu0 0.0
        %868 = vmatpush1.xpose.msra.mxu0 %v865
        %869 = vmatprep.subr.mxu0 0.0
        %870 = vmatpush1.xpose.msra.mxu0 0.0
        %871 = vmatprep.subr.mxu0 0.0
        %872 = vmatpush1.xpose.msra.mxu0 0.0
        %873 = vmatprep.subr.mxu0 0.0
        %874 = vmatpush1.xpose.msra.mxu0 0.0
        %875 = vmatprep.subr.mxu0 0.0
        %876 = vmatpush1.xpose.msra.mxu0 0.0
        %877 = vmatprep.subr.mxu0 0.0
        %878 = vmatpush1.xpose.msra.mxu0 0.0
        %879 = vmatprep.subr.mxu0 0.0
        %880 = vmatpush1.xpose.msra.mxu0 0.0
        %881 = vmatprep.subr.mxu0 0.0
        %882 = vmatpush1.xpose.msra.mxu0 0.0
        %883 = vmatprep.subr.mxu0 0.0
        %884 = vmatpush1.xpose.msra.mxu0 0.0
        %885 = vmatprep.subr.mxu0 0.0
        %886 = vmatpush1.xpose.msra.mxu0 0.0
        %887 = vmatprep.subr.mxu0 0.0
        %888 = vmatpush1.xpose.msra.mxu0 0.0
        %889 = vmatprep.subr.mxu0 0.0
        %890 = vmatpush1.xpose.msra.mxu0 0.0
        %891 = vmatprep.subr.mxu0 0.0
        %892 = vmatpush1.xpose.msra.mxu0 0.0
        %893 = vmatprep.subr.mxu0 0.0
        %894 = vmatpush1.xpose.msra.mxu0 0.0
        %895 = vmatprep.subr.mxu0 0.0
        %896 = vmatpush1.xpose.msra.mxu0 0.0
        %897 = vmatprep.subr.mxu0 0.0
        %898 = vmatpush1.xpose.msra.mxu0 0.0
        %899 = vmatprep.subr.mxu0 0.0
        %900 = vmatpush1.xpose.msra.mxu0 0.0
        %901 = vmatprep.subr.mxu0 0.0
        %902 = vmatpush1.xpose.msra.mxu0 0.0
        %903 = vmatprep.subr.mxu0 0.0
        %904 = vmatpush1.xpose.msra.mxu0 0.0
        %905 = vmatprep.subr.mxu0 0.0
        %906 = vmatpush1.xpose.msra.mxu0 0.0
        %907 = vmatprep.subr.mxu0 0.0
        %908 = vmatpush1.xpose.msra.mxu0 0.0
        %909 = vmatprep.subr.mxu0 0.0
        %910 = vmatpush1.xpose.msra.mxu0 0.0
        %911 = vmatprep.subr.mxu0 0.0
        %912 = vmatpush1.xpose.msra.mxu0 0.0
        %913 = vmatprep.subr.mxu0 0.0
        %914 = vmatpush1.xpose.msra.mxu0 0.0
        %915 = vmatprep.subr.mxu0 0.0
        %916 = vmatpush1.xpose.msra.mxu0 0.0
        %917 = vmatprep.subr.mxu0 0.0
        %918 = vmatpush1.xpose.msra.mxu0 0.0
        %919 = vmatprep.subr.mxu0 0.0
        %920 = vmatpush1.xpose.msra.mxu0 0.0
        %921 = vmatprep.subr.mxu0 0.0
        %922 = vmatpush1.xpose.msra.mxu0 0.0
        %923 = vmatprep.subr.mxu0 0.0
        %924 = vmatpush1.xpose.msra.mxu0 0.0
        %925 = vmatprep.subr.mxu0 0.0
        %926 = vmatpush1.xpose.msra.mxu0 0.0
        %927 = vmatprep.subr.mxu0 0.0
        %928 = vmatpush1.xpose.msra.mxu0 0.0
        %929 = vmatprep.subr.mxu0 0.0
        %930 = vmatpush1.xpose.msra.mxu0 0.0
        %931 = vmatprep.mubr.f32.mxu0 0.0
        %932 = vmatmul.mubr.f32.gmra.mrb[0].mxu0 %v863
        %v933 = vpop.f32.mrb[0].mxu0
        %v934 = vadd.f32 0.0, %v933
        %v935 = vpop.f32.mrb[0].mxu0
        %936 = vdwg.mxu0
        %v937 = vsel %vm532, %v934, -inf
        %938 = vmax.xlane.f32.xlu0 %v937
        %v939 = vpop.xlane.xlu0 %938
        %v940 = vsub.f32 %v934, %v939
        %v941 = vmul.f32 %v940, 1.442695
        %v942 = vpow.pop %v941
        %v943 = vsel %vm532, %v942, 0.0
        %944 = vadd.xlane.f32.xlu0 %v943
        %v945 = vpop.xlane.xlu0 %944
        %v946 = vrcp.pop %v945
        %v947 = vmul.f32 %v942, %v946
        %948 = vrot.lane.b32.xlu0 %v448, 112
        %v949 = vpop.permute.xlu0 %948
        %v952 = vsel %vm532, %v947, 0
        %954 = vmatprep.subr.mxu0 0.0
        %955 = vmatpush1.msra.mxu0 %v949
        %956 = vmatprep.subr.mxu0 0.0
        %957 = vmatpush1.msra.mxu0 0.0
        %958 = vmatprep.subr.mxu0 0.0
        %959 = vmatpush1.msra.mxu0 0.0
        %960 = vmatprep.subr.mxu0 0.0
        %961 = vmatpush1.msra.mxu0 0.0
        %962 = vmatprep.subr.mxu0 0.0
        %963 = vmatpush1.msra.mxu0 0.0
        %964 = vmatprep.subr.mxu0 0.0
        %965 = vmatpush1.msra.mxu0 0.0
        %966 = vmatprep.subr.mxu0 0.0
        %967 = vmatpush1.msra.mxu0 0.0
        %968 = vmatprep.subr.mxu0 0.0
        %969 = vmatpush1.msra.mxu0 0.0
        %970 = vmatprep.subr.mxu0 0.0
        %971 = vmatpush1.msra.mxu0 0.0
        %972 = vmatprep.subr.mxu0 0.0
        %973 = vmatpush1.msra.mxu0 0.0
        %974 = vmatprep.subr.mxu0 0.0
        %975 = vmatpush1.msra.mxu0 0.0
        %976 = vmatprep.subr.mxu0 0.0
        %977 = vmatpush1.msra.mxu0 0.0
        %978 = vmatprep.subr.mxu0 0.0
        %979 = vmatpush1.msra.mxu0 0.0
        %980 = vmatprep.subr.mxu0 0.0
        %981 = vmatpush1.msra.mxu0 0.0
        %982 = vmatprep.subr.mxu0 0.0
        %983 = vmatpush1.msra.mxu0 0.0
        %984 = vmatprep.subr.mxu0 0.0
        %985 = vmatpush1.msra.mxu0 0.0
        %986 = vmatprep.subr.mxu0 0.0
        %987 = vmatpush1.msra.mxu0 0.0
        %988 = vmatprep.subr.mxu0 0.0
        %989 = vmatpush1.msra.mxu0 0.0
        %990 = vmatprep.subr.mxu0 0.0
        %991 = vmatpush1.msra.mxu0 0.0
        %992 = vmatprep.subr.mxu0 0.0
        %993 = vmatpush1.msra.mxu0 0.0
        %994 = vmatprep.subr.mxu0 0.0
        %995 = vmatpush1.msra.mxu0 0.0
        %996 = vmatprep.subr.mxu0 0.0
        %997 = vmatpush1.msra.mxu0 0.0
        %998 = vmatprep.subr.mxu0 0.0
        %999 = vmatpush1.msra.mxu0 0.0
        %1000 = vmatprep.subr.mxu0 0.0
        %1001 = vmatpush1.msra.mxu0 0.0
        %1002 = vmatprep.subr.mxu0 0.0
        %1003 = vmatpush1.msra.mxu0 0.0
        %1004 = vmatprep.subr.mxu0 0.0
        %1005 = vmatpush1.msra.mxu0 0.0
        %1006 = vmatprep.subr.mxu0 0.0
        %1007 = vmatpush1.msra.mxu0 0.0
        %1008 = vmatprep.subr.mxu0 0.0
        %1009 = vmatpush1.msra.mxu0 0.0
        %1010 = vmatprep.subr.mxu0 0.0
        %1011 = vmatpush1.msra.mxu0 0.0
        %1012 = vmatprep.subr.mxu0 0.0
        %1013 = vmatpush1.msra.mxu0 0.0
        %1014 = vmatprep.subr.mxu0 0.0
        %1015 = vmatpush1.msra.mxu0 0.0
        %1016 = vmatprep.subr.mxu0 0.0
        %1017 = vmatpush1.msra.mxu0 0.0
        %1018 = vmatprep.mubr.f32.mxu0 0.0
        %1019 = vmatmul.mubr.f32.gmra.mrb[0].mxu0 %v952
        %v1020 = vpop.f32.mrb[0].mxu0
        %v1021 = vadd.f32 0.0, %v1020
        %v1022 = vpop.f32.mrb[0].mxu0
        %1023 = vdwg.mxu0
        %1024 = vrot.lane.b32.xlu0 %v531, 104
        %v1025 = vpop.permute.xlu0 %1024
        %1026 = vrot.lane.b32.xlu0 %v447, 104
        %v1027 = vpop.permute.xlu0 %1026
        %v1028 = vsel %vm532, %v1025, 0
        %v1030 = vsel %vm532, %v1027, 0
        %1032 = vmatprep.subr.mxu0 0.0
        %1033 = vmatpush1.xpose.msra.mxu0 %v1030
        %1034 = vmatprep.subr.mxu0 0.0
        %1035 = vmatpush1.xpose.msra.mxu0 0.0
        %1036 = vmatprep.subr.mxu0 0.0
        %1037 = vmatpush1.xpose.msra.mxu0 0.0
        %1038 = vmatprep.subr.mxu0 0.0
        %1039 = vmatpush1.xpose.msra.mxu0 0.0
        %1040 = vmatprep.subr.mxu0 0.0
        %1041 = vmatpush1.xpose.msra.mxu0 0.0
        %1042 = vmatprep.subr.mxu0 0.0
        %1043 = vmatpush1.xpose.msra.mxu0 0.0
        %1044 = vmatprep.subr.mxu0 0.0
        %1045 = vmatpush1.xpose.msra.mxu0 0.0
        %1046 = vmatprep.subr.mxu0 0.0
        %1047 = vmatpush1.xpose.msra.mxu0 0.0
        %1048 = vmatprep.subr.mxu0 0.0
        %1049 = vmatpush1.xpose.msra.mxu0 0.0
        %1050 = vmatprep.subr.mxu0 0.0
        %1051 = vmatpush1.xpose.msra.mxu0 0.0
        %1052 = vmatprep.subr.mxu0 0.0
        %1053 = vmatpush1.xpose.msra.mxu0 0.0
        %1054 = vmatprep.subr.mxu0 0.0
        %1055 = vmatpush1.xpose.msra.mxu0 0.0
        %1056 = vmatprep.subr.mxu0 0.0
        %1057 = vmatpush1.xpose.msra.mxu0 0.0
        %1058 = vmatprep.subr.mxu0 0.0
        %1059 = vmatpush1.xpose.msra.mxu0 0.0
        %1060 = vmatprep.subr.mxu0 0.0
        %1061 = vmatpush1.xpose.msra.mxu0 0.0
        %1062 = vmatprep.subr.mxu0 0.0
        %1063 = vmatpush1.xpose.msra.mxu0 0.0
        %1064 = vmatprep.subr.mxu0 0.0
        %1065 = vmatpush1.xpose.msra.mxu0 0.0
        %1066 = vmatprep.subr.mxu0 0.0
        %1067 = vmatpush1.xpose.msra.mxu0 0.0
        %1068 = vmatprep.subr.mxu0 0.0
        %1069 = vmatpush1.xpose.msra.mxu0 0.0
        %1070 = vmatprep.subr.mxu0 0.0
        %1071 = vmatpush1.xpose.msra.mxu0 0.0
        %1072 = vmatprep.subr.mxu0 0.0
        %1073 = vmatpush1.xpose.msra.mxu0 0.0
        %1074 = vmatprep.subr.mxu0 0.0
        %1075 = vmatpush1.xpose.msra.mxu0 0.0
        %1076 = vmatprep.subr.mxu0 0.0
        %1077 = vmatpush1.xpose.msra.mxu0 0.0
        %1078 = vmatprep.subr.mxu0 0.0
        %1079 = vmatpush1.xpose.msra.mxu0 0.0
        %1080 = vmatprep.subr.mxu0 0.0
        %1081 = vmatpush1.xpose.msra.mxu0 0.0
        %1082 = vmatprep.subr.mxu0 0.0
        %1083 = vmatpush1.xpose.msra.mxu0 0.0
        %1084 = vmatprep.subr.mxu0 0.0
        %1085 = vmatpush1.xpose.msra.mxu0 0.0
        %1086 = vmatprep.subr.mxu0 0.0
        %1087 = vmatpush1.xpose.msra.mxu0 0.0
        %1088 = vmatprep.subr.mxu0 0.0
        %1089 = vmatpush1.xpose.msra.mxu0 0.0
        %1090 = vmatprep.subr.mxu0 0.0
        %1091 = vmatpush1.xpose.msra.mxu0 0.0
        %1092 = vmatprep.subr.mxu0 0.0
        %1093 = vmatpush1.xpose.msra.mxu0 0.0
        %1094 = vmatprep.subr.mxu0 0.0
        %1095 = vmatpush1.xpose.msra.mxu0 0.0
        %1096 = vmatprep.mubr.f32.mxu0 0.0
        %1097 = vmatmul.mubr.f32.gmra.mrb[0].mxu0 %v1028
        %v1098 = vpop.f32.mrb[0].mxu0
        %v1099 = vadd.f32 0.0, %v1098
        %v1100 = vpop.f32.mrb[0].mxu0
        %1101 = vdwg.mxu0
        %v1102 = vsel %vm532, %v1099, -inf
        %1103 = vmax.xlane.f32.xlu0 %v1102
        %v1104 = vpop.xlane.xlu0 %1103
        %v1105 = vsub.f32 %v1099, %v1104
        %v1106 = vmul.f32 %v1105, 1.442695
        %v1107 = vpow.pop %v1106
        %v1108 = vsel %vm532, %v1107, 0.0
        %1109 = vadd.xlane.f32.xlu0 %v1108
        %v1110 = vpop.xlane.xlu0 %1109
        %v1111 = vrcp.pop %v1110
        %v1112 = vmul.f32 %v1107, %v1111
        %1113 = vrot.lane.b32.xlu0 %v448, 104
        %v1114 = vpop.permute.xlu0 %1113
        %v1117 = vsel %vm532, %v1112, 0
        %1119 = vmatprep.subr.mxu0 0.0
        %1120 = vmatpush1.msra.mxu0 %v1114
        %1121 = vmatprep.subr.mxu0 0.0
        %1122 = vmatpush1.msra.mxu0 0.0
        %1123 = vmatprep.subr.mxu0 0.0
        %1124 = vmatpush1.msra.mxu0 0.0
        %1125 = vmatprep.subr.mxu0 0.0
        %1126 = vmatpush1.msra.mxu0 0.0
        %1127 = vmatprep.subr.mxu0 0.0
        %1128 = vmatpush1.msra.mxu0 0.0
        %1129 = vmatprep.subr.mxu0 0.0
        %1130 = vmatpush1.msra.mxu0 0.0
        %1131 = vmatprep.subr.mxu0 0.0
        %1132 = vmatpush1.msra.mxu0 0.0
        %1133 = vmatprep.subr.mxu0 0.0
        %1134 = vmatpush1.msra.mxu0 0.0
        %1135 = vmatprep.subr.mxu0 0.0
        %1136 = vmatpush1.msra.mxu0 0.0
        %1137 = vmatprep.subr.mxu0 0.0
        %1138 = vmatpush1.msra.mxu0 0.0
        %1139 = vmatprep.subr.mxu0 0.0
        %1140 = vmatpush1.msra.mxu0 0.0
        %1141 = vmatprep.subr.mxu0 0.0
        %1142 = vmatpush1.msra.mxu0 0.0
        %1143 = vmatprep.subr.mxu0 0.0
        %1144 = vmatpush1.msra.mxu0 0.0
        %1145 = vmatprep.subr.mxu0 0.0
        %1146 = vmatpush1.msra.mxu0 0.0
        %1147 = vmatprep.subr.mxu0 0.0
        %1148 = vmatpush1.msra.mxu0 0.0
        %1149 = vmatprep.subr.mxu0 0.0
        %1150 = vmatpush1.msra.mxu0 0.0
        %1151 = vmatprep.subr.mxu0 0.0
        %1152 = vmatpush1.msra.mxu0 0.0
        %1153 = vmatprep.subr.mxu0 0.0
        %1154 = vmatpush1.msra.mxu0 0.0
        %1155 = vmatprep.subr.mxu0 0.0
        %1156 = vmatpush1.msra.mxu0 0.0
        %1157 = vmatprep.subr.mxu0 0.0
        %1158 = vmatpush1.msra.mxu0 0.0
        %1159 = vmatprep.subr.mxu0 0.0
        %1160 = vmatpush1.msra.mxu0 0.0
        %1161 = vmatprep.subr.mxu0 0.0
        %1162 = vmatpush1.msra.mxu0 0.0
        %1163 = vmatprep.subr.mxu0 0.0
        %1164 = vmatpush1.msra.mxu0 0.0
        %1165 = vmatprep.subr.mxu0 0.0
        %1166 = vmatpush1.msra.mxu0 0.0
        %1167 = vmatprep.subr.mxu0 0.0
        %1168 = vmatpush1.msra.mxu0 0.0
        %1169 = vmatprep.subr.mxu0 0.0
        %1170 = vmatpush1.msra.mxu0 0.0
        %1171 = vmatprep.subr.mxu0 0.0
        %1172 = vmatpush1.msra.mxu0 0.0
        %1173 = vmatprep.subr.mxu0 0.0
        %1174 = vmatpush1.msra.mxu0 0.0
        %1175 = vmatprep.subr.mxu0 0.0
        %1176 = vmatpush1.msra.mxu0 0.0
        %1177 = vmatprep.subr.mxu0 0.0
        %1178 = vmatpush1.msra.mxu0 0.0
        %1179 = vmatprep.subr.mxu0 0.0
        %1180 = vmatpush1.msra.mxu0 0.0
        %1181 = vmatprep.subr.mxu0 0.0
        %1182 = vmatpush1.msra.mxu0 0.0
        %1183 = vmatprep.mubr.f32.mxu0 0.0
        %1184 = vmatmul.mubr.f32.gmra.mrb[0].mxu0 %v1117
        %v1185 = vpop.f32.mrb[0].mxu0
        %v1186 = vadd.f32 0.0, %v1185
        %v1187 = vpop.f32.mrb[0].mxu0
        %1188 = vdwg.mxu0
        %1190 = vrot.lane.b32.xlu0 %v856, 8
        %v1191 = vpop.permute.xlu0 %1190
        %1194 = vrot.lane.b32.xlu0 %v1021, 16
        %v1195 = vpop.permute.xlu0 %1194
        %1198 = vrot.lane.b32.xlu0 %v1186, 24
        %v1199 = vpop.permute.xlu0 %1198
        %v1201 = vsel %vm532, %v690, %v1191
        %vm1202 = vcmask 130048
        %v1203 = vsel %vm1202, %v1201, %v1195
        %vm1204 = vcmask 195584
        %v1205 = vsel %vm1204, %v1203, %v1199
        %v1206 = vld [vmem:[#allocation2] sm:$0xff]
        %v1208 = vsel %vm457, %v1205, 0
        %1210 = vmatprep.subr.mxu0 0.0
        %1211 = vmatpush1.msra.mxu0 %v453
        %1212 = vmatprep.subr.mxu0 0.0
        %1213 = vmatpush1.msra.mxu0 %v454
        %1214 = vmatprep.subr.mxu0 0.0
        %1215 = vmatpush1.msra.mxu0 %v455
        %1216 = vmatprep.subr.mxu0 0.0
        %1217 = vmatpush1.msra.mxu0 %v456
        %1218 = vmatprep.subr.mxu0 0.0
        %1219 = vmatpush1.msra.mxu0 0.0
        %1220 = vmatprep.subr.mxu0 0.0
        %1221 = vmatpush1.msra.mxu0 0.0
        %1222 = vmatprep.subr.mxu0 0.0
        %1223 = vmatpush1.msra.mxu0 0.0
        %1224 = vmatprep.subr.mxu0 0.0
        %1225 = vmatpush1.msra.mxu0 0.0
        %1226 = vmatprep.subr.mxu0 0.0
        %1227 = vmatpush1.msra.mxu0 0.0
        %1228 = vmatprep.subr.mxu0 0.0
        %1229 = vmatpush1.msra.mxu0 0.0
        %1230 = vmatprep.subr.mxu0 0.0
        %1231 = vmatpush1.msra.mxu0 0.0
        %1232 = vmatprep.subr.mxu0 0.0
        %1233 = vmatpush1.msra.mxu0 0.0
        %1234 = vmatprep.subr.mxu0 0.0
        %1235 = vmatpush1.msra.mxu0 0.0
        %1236 = vmatprep.subr.mxu0 0.0
        %1237 = vmatpush1.msra.mxu0 0.0
        %1238 = vmatprep.subr.mxu0 0.0
        %1239 = vmatpush1.msra.mxu0 0.0
        %1240 = vmatprep.subr.mxu0 0.0
        %1241 = vmatpush1.msra.mxu0 0.0
        %1242 = vmatprep.subr.mxu0 0.0
        %1243 = vmatpush1.msra.mxu0 0.0
        %1244 = vmatprep.subr.mxu0 0.0
        %1245 = vmatpush1.msra.mxu0 0.0
        %1246 = vmatprep.subr.mxu0 0.0
        %1247 = vmatpush1.msra.mxu0 0.0
        %1248 = vmatprep.subr.mxu0 0.0
        %1249 = vmatpush1.msra.mxu0 0.0
        %1250 = vmatprep.subr.mxu0 0.0
        %1251 = vmatpush1.msra.mxu0 0.0
        %1252 = vmatprep.subr.mxu0 0.0
        %1253 = vmatpush1.msra.mxu0 0.0
        %1254 = vmatprep.subr.mxu0 0.0
        %1255 = vmatpush1.msra.mxu0 0.0
        %1256 = vmatprep.subr.mxu0 0.0
        %1257 = vmatpush1.msra.mxu0 0.0
        %1258 = vmatprep.subr.mxu0 0.0
        %1259 = vmatpush1.msra.mxu0 0.0
        %1260 = vmatprep.subr.mxu0 0.0
        %1261 = vmatpush1.msra.mxu0 0.0
        %1262 = vmatprep.subr.mxu0 0.0
        %1263 = vmatpush1.msra.mxu0 0.0
        %1264 = vmatprep.subr.mxu0 0.0
        %1265 = vmatpush1.msra.mxu0 0.0
        %1266 = vmatprep.subr.mxu0 0.0
        %1267 = vmatpush1.msra.mxu0 0.0
        %1268 = vmatprep.subr.mxu0 0.0
        %1269 = vmatpush1.msra.mxu0 0.0
        %1270 = vmatprep.subr.mxu0 0.0
        %1271 = vmatpush1.msra.mxu0 0.0
        %1272 = vmatprep.subr.mxu0 0.0
        %1273 = vmatpush1.msra.mxu0 0.0
        %1274 = vmatprep.mubr.f32.mxu0 0.0
        %1275 = vmatmul.mubr.f32.gmra.mrb[0].mxu0 %v1208
        %v1276 = vpop.f32.mrb[0].mxu0
        %v1277 = vadd.f32 0.0, %v1276
        %v1278 = vpop.f32.mrb[0].mxu0
        %1279 = vdwg.mxu0
        %v1280 = vadd.f32 %v1206, %v1277
        %1281 = vst.msk [vmem:[#allocation2] sm:$0xff] %vm457, %v1280
        // Predicated region
        $region73: #{tpu_custom_call.1} parent=47 // pred_check
          %p1282 = pneg %p440
        $region74: #{tpu_custom_call.1} parent=47 // pred_check_branch
          %1284 = sbr.rel (%p1282) target = $region76
        $region75: #{tpu_custom_call.1} parent=47 // pred_region
          %v1285 = vld [vmem:[%s5] sm:$0x1]
          %v1286 = vld [vmem:[%s6] sm:$0x1]
          %v1287 = vld [vmem:[#allocation2] sm:$0xff]
          %v1288 = vadd.f32 %v446, %v1287
          %v1289 = vsel %vm457, %v1288, 0.0
          %1290 = vadd.xlane.f32.xlu0 %v1289
          %v1291 = vpop.xlane.xlu0 %1290
          %v1292 = vrcp.pop 32.0
          %v1293 = vmul.f32 %v1291, %v1292
          %v1294 = vsub.f32 %v1288, %v1293
          %v1295 = vmul.f32 %v1294, %v1294
          %v1296 = vsel %vm457, %v1295, 0.0
          %1297 = vadd.xlane.f32.xlu0 %v1296
          %v1298 = vpop.xlane.xlu0 %1297
          %v1299 = vmul.f32 %v1298, %v1292
          %v1300 = vadd.f32 %v1299, 1e-05
          %v1301 = vrsqrt.pop %v1300
          %v1302 = vmul.f32 %v1294, %v1301
          %v1304 = vlaneseq
          %v1305 = vshrl.u32 %v1304, 7
          %v1306 = vsub.s32 0, %v1305
          %v1307 = vrot.slane %v1285, %v1306
          %v1309 = vmul.f32 %v1302, %v1307
          %v1311 = vlaneseq
          %v1312 = vshrl.u32 %v1311, 7
          %v1313 = vsub.s32 0, %v1312
          %v1314 = vrot.slane %v1286, %v1313
          %v1316 = vadd.f32 %v1309, %v1314
          %1317 = vst.msk [vmem:[%s438] sm:$0xff] %vm457, %v1316
        $region76: #{tpu_custom_call.1} parent=47 // pred_fallthru
          _
        %s1318 = sand.u32 %s235, 1
        %s1319 = scalar_lea.sflag [#allocation5], %s1318
        %s1320 = sand.u32 %s235, 1
        %s1321 = smul.addr %s1320, 8
        %s1322 = scalar_lea.vmem [#allocation12], %s1321
        // Predicated region
        $region77: #{tpu_custom_call.1} parent=47 // pred_check
          %p1323 = pneg %p245
        $region78: #{tpu_custom_call.1} parent=47 // pred_check_branch
          %1325 = sbr.rel (%p1323) target = $region80
        $region79: #{tpu_custom_call.1} parent=47 // pred_region
          %s1327 = ssub.s32 128, 128
          %1328 = vsyncadd %s1319, %s1327
          %s1329 = sadd.s32 %s34, %s33
          %s1330 = smul.addr %s1329, 128
          %s1331 = scalar_lea.hbm %s7, %s1330
          %s1333 = sshll.u32 %s1322, 4
          %s1334 = int_to_ptr.vmem [resolvable:$true] %s1333
          %1336 = dma.vmem_to_hbm [thread:$0]  %s1334, 128, %s1331, %s1319
        $region80: #{tpu_custom_call.1} parent=47 // pred_fallthru
          _
      $region48: #{tpu_custom_call.1} parent=5 // pred_fallthru
        _
      %p1337 = scmp.le.s32.totalorder 2, %s23
      // Predicated region
      $region81: #{tpu_custom_call.1} parent=5 // pred_check
        %p1338 = pneg %p1337
      $region82: #{tpu_custom_call.1} parent=5 // pred_check_branch
        %1340 = sbr.rel (%p1338) target = $region84
      $region83: #{tpu_custom_call.1} parent=5 // pred_region
        %s1341 = ssub.s32 %s23, 2
        // Predicated region
        $region85: #{tpu_custom_call.1} parent=83 // pred_check
          %p1342 = pneg %p251
        $region86: #{tpu_custom_call.1} parent=83 // pred_check_branch
          %1344 = sbr.rel (%p1342) target = $region88
        $region87: #{tpu_custom_call.1} parent=83 // pred_region
          %s1345 = sand.u32 %s236, 1
          %s1346 = scalar_lea.sflag [#allocation5], %s1345
          %s1347 = sand.u32 %s236, 1
          %s1348 = smul.addr %s1347, 8
          %s1349 = scalar_lea.vmem [#allocation12], %s1348
          %1350 = dma.done %s1346, 128
        $region88: #{tpu_custom_call.1} parent=83 // pred_fallthru
          _
      $region84: #{tpu_custom_call.1} parent=5 // pred_fallthru
        _
    $region6: #{tpu_custom_call.1} parent=1 // loop_footer
      %s27 = sadd.s32 1, %s23
    $region7: #{tpu_custom_call.1} parent=1 // loop_footer_branch
      %22 = sbr.rel target = $region3
    $region8: #{tpu_custom_call.1} parent=1 // loop_exit
      _
    %1351 = vsyncpa [#allocation4], 1
    %s1352 = scalar_lea.sflag [#allocation4], 1
    %1353 = vsyncpa %s1352, 1
    %1354 = vsyncpa [#allocation7], 1
    %s1355 = scalar_lea.sflag [#allocation7], 1
    %1356 = vsyncpa %s1355, 1
    %1357 = vsyncpa [#allocation10], 1
    %1358 = vsyncpa [#allocation5], 1
    %s1359 = scalar_lea.sflag [#allocation5], 1
    %1360 = vsyncpa %s1359, 1

</llo_original>
